<compile_context>
chip_gen: v5e
topology: v5e:2x2
jax: 0.10.0
libtpu: 0.0.40
codegen_flags: <defaults>
</compile_context>

<pallas_src>
import math
from functools import partial

import jax
import jax.numpy as jnp
from jax import lax
from jax.experimental import pallas as pl
from jax.experimental.pallas import tpu as pltpu


# ---------------------------------------------------------------------------
# In-kernel helpers
# ---------------------------------------------------------------------------
def _layernorm(x, g, b, eps=1e-5):
    # PyTorch nn.LayerNorm: biased variance over last dim, eps=1e-5.  f32 math.
    mu = jnp.mean(x, axis=-1, keepdims=True)
    xc = x - mu
    var = jnp.mean(xc * xc, axis=-1, keepdims=True)
    return xc * lax.rsqrt(var + eps) * g + b


# ---------------------------------------------------------------------------
# Fused Encoder kernel: n_layers x (MHA + LN, FF + LN) + final LayerNorm.
# One grid step processes one batch element; all layer weights are resident,
# single-buffered, in VMEM.
# ---------------------------------------------------------------------------
def encoder_kernel(n_layers, n_heads,
                   x_ref,
                   wqkv_ref, bqkv_ref, wo_ref, bo_ref,
                   w1_ref, b1_ref, w2_ref, b2_ref,
                   g1_ref, be1_ref, g2_ref, be2_ref,
                   gf_ref, bf_ref,
                   o_ref):
    x = x_ref[0]                                   # (S, D) f32
    S, D = x.shape
    e = D // n_heads                               # d_k

    # Static unroll over layers: fine at n_layers=2.
    # TODO(synk): at real depth, switch to a layer grid axis (weights indexed
    # by layer, streamed + double-buffered) or lax.fori_loop over layer-stacked
    # refs to bound vreg live ranges and fit v7x's 64 MiB/TC VMEM.
    for l in range(n_layers):
        # ---------------- multi-head self-attention ----------------
        # One full-K MXU contraction: (S,D) @ (D,3D) -> (S,3D).  The softmax
        # scale 1/sqrt(d_k) is already folded into the Q columns / bias.
        qkv = (jnp.dot(x.astype(jnp.bfloat16), wqkv_ref[l],
                       preferred_element_type=jnp.float32)
               + bqkv_ref[l]).astype(jnp.bfloat16)            # (S, 3D)

        # Per-head recovery: static lane slices + stack along a new leading
        # (untiled) axis — no lane-dim reshape, no broadcast of x.
        def heads(base):
            return jnp.stack([qkv[:, base + h * e: base + (h + 1) * e]
                              for h in range(n_heads)])       # (H, S, e) bf16
        q = heads(0)
        k = heads(D)
        v = heads(2 * D)

        # Head-batched QK^T (scale pre-folded) + softmax in f32.
        # TODO(synk): producing K pre-transposed (H,e,S) would dodge a possible
        # XLU relayout here (review #11); at d_k=8 it is noise.
        s = jnp.einsum("hqe,hke->hqk", q, k,
                       preferred_element_type=jnp.float32)    # (H, S, S) f32
        s = s - jnp.max(s, axis=-1, keepdims=True)
        p = jnp.exp(s)
        p = p / jnp.sum(p, axis=-1, keepdims=True)            # exact division

        # Head-batched PV.
        ctx = jnp.einsum("hqk,hke->hqe", p.astype(jnp.bfloat16), v,
                         preferred_element_type=jnp.float32)  # (H, S, e) f32

        # combine_heads + W_O:  concat_h(ctx_h) @ W_O == sum_h ctx_h @ W_O[h].
        # TODO(synk): the review's single K=D contraction ("hse,hed->sd") needs
        # a multi-contracting-dim dot_general / sub-128 lane repack that the
        # Mosaic lowering does not reliably support — keep the head-batched
        # matmul + cross-head sum (bit-identical result).
        attn = jnp.sum(
            jnp.einsum("hqe,hed->hqd", ctx.astype(jnp.bfloat16), wo_ref[l],
                       preferred_element_type=jnp.float32),
            axis=0) + bo_ref[l]                               # (S, D) f32

        # residual + LayerNorm1 (dropout1 == identity at inference)
        x = _layernorm(x + attn, g1_ref[l], be1_ref[l])

        # ---------------- feed-forward ----------------
        h1 = jnp.maximum(
            jnp.dot(x.astype(jnp.bfloat16), w1_ref[l],
                    preferred_element_type=jnp.float32) + b1_ref[l], 0.0)
        ff = jnp.dot(h1.astype(jnp.bfloat16), w2_ref[l],
                     preferred_element_type=jnp.float32) + b2_ref[l]

        # residual + LayerNorm2 (dropout2 == identity at inference)
        x = _layernorm(x + ff, g2_ref[l], be2_ref[l])

    # final Encoder LayerNorm.
    # NOTE (review #4): with toy D=32 this store is lane-masked; a lane-dense
    # (B, S*D) writeback needs an in-kernel (S,D)->(S*D,) sub-tile relayout that
    # Mosaic may not lower.  At real sizes keep D a multiple of 128 and the
    # store is lane-dense as-is.
    o_ref[0] = _layernorm(x, gf_ref[...], bf_ref[...])


_PARAM_ORDER = ("wqkv", "bqkv", "wo", "bo", "w1", "b1", "w2", "b2",
                "g1", "be1", "g2", "be2", "ln_g", "ln_b")


def encoder_pallas(x, kparams, n_layers, n_heads):
    """Run the fused encoder stack on x: (B, S, D) f32 -> (B, S, D) f32."""
    B, S, D = x.shape
    weights = [kparams[name] for name in _PARAM_ORDER]

    # Activations: blocked per batch element (grid axis; "parallel" so v7x's
    # two TensorCores each take one batch element).
    in_specs = [pl.BlockSpec((1, S, D), lambda b: (b, 0, 0))]
    # Weights: whole-array, single-buffered VMEM residents (no block shape =>
    # no pipelining, no double buffer) — review #5.
    in_specs += [pl.BlockSpec(memory_space=pltpu.MemorySpace.VMEM)
                 for _ in weights]

    # Scoped-VMEM budget from the actual resident footprint (review #10):
    # single-buffered weights + double-buffered activation blocks + headroom.
    weight_bytes = sum(int(w.size) * w.dtype.itemsize for w in weights)
    act_bytes = S * D * 4
    vmem_limit = int(min(64 * 1024 * 1024,
                         max(16 * 1024 * 1024,
                             2 * weight_bytes + 8 * act_bytes + (4 << 20))))

    return pl.pallas_call(
        partial(encoder_kernel, n_layers, n_heads),
        out_shape=jax.ShapeDtypeStruct((B, S, D), jnp.float32),
        grid_spec=pltpu.PrefetchScalarGridSpec(
            num_scalar_prefetch=0,
            grid=(B,),                      # v7x: 2 TCs; v5e/v6e: trivial loop
            in_specs=in_specs,
            out_specs=pl.BlockSpec((1, S, D), lambda b: (b, 0, 0)),
        ),
        compiler_params=pltpu.CompilerParams(
            dimension_semantics=("parallel",),
            vmem_limit_bytes=vmem_limit),
    )(x, *weights)


# ---------------------------------------------------------------------------
# Parameter init (deterministic, synthetic) — f32 master copies
# ---------------------------------------------------------------------------
def init_params(key, input_size, d_model, d_ff, n_layers, max_len=5000):
    keys = jax.random.split(key, 1 + n_layers)
    params = {}
    params["embedding"] = 0.02 * jax.random.normal(
        keys[0], (input_size, d_model), jnp.float32)

    # sinusoidal positional encoding (as in PositionalEncoding.__init__)
    pos = jnp.arange(max_len, dtype=jnp.float32)[:, None]
    div = jnp.exp(jnp.arange(0, d_model, 2, dtype=jnp.float32)
                  * (-math.log(10000.0) / d_model))
    pe = jnp.zeros((max_len, d_model), jnp.float32)
    pe = pe.at[:, 0::2].set(jnp.sin(pos * div))
    pe = pe.at[:, 1::2].set(jnp.cos(pos * div))
    params["pe"] = pe

    D = d_model
    layers = []
    for i in range(n_layers):
        lk = jax.random.split(keys[1 + i], 12)
        layers.append(dict(
            # Linear weights stored pre-transposed (in, out) so y = x @ W + b
            wq=0.05 * jax.random.normal(lk[0], (D, D), jnp.float32),
            bq=0.02 * jax.random.normal(lk[1], (D,), jnp.float32),
            wk=0.05 * jax.random.normal(lk[2], (D, D), jnp.float32),
            bk=0.02 * jax.random.normal(lk[3], (D,), jnp.float32),
            wv=0.05 * jax.random.normal(lk[4], (D, D), jnp.float32),
            bv=0.02 * jax.random.normal(lk[5], (D,), jnp.float32),
            wo=0.05 * jax.random.normal(lk[6], (D, D), jnp.float32),
            bo=0.02 * jax.random.normal(lk[7], (D,), jnp.float32),
            w1=0.05 * jax.random.normal(lk[8], (D, d_ff), jnp.float32),
            b1=0.02 * jax.random.normal(lk[9], (d_ff,), jnp.float32),
            w2=0.05 * jax.random.normal(lk[10], (d_ff, D), jnp.float32),
            b2=0.02 * jax.random.normal(lk[11], (D,), jnp.float32),
            g1=jnp.ones((D,), jnp.float32), be1=jnp.zeros((D,), jnp.float32),
            g2=jnp.ones((D,), jnp.float32), be2=jnp.zeros((D,), jnp.float32),
        ))
    params["layers"] = layers
    params["ln_g"] = jnp.ones((D,), jnp.float32)
    params["ln_b"] = jnp.zeros((D,), jnp.float32)
    return params


def pack_params(params, n_heads):
    """Pack per-layer weights into the fused kernel layout.

    * wqkv: (L, D, 3D) bf16, columns = [Q | K | V], head-major inside each
      block (PyTorch split_heads takes contiguous d_k chunks, so wq's columns
      are already head-major).  The 1/sqrt(d_k) softmax scale is folded into
      the Q columns and bias (review #3).
    * Matmul weights (wqkv, wo, w1, w2) are bf16 (review #9); biases and
      LayerNorm params stay f32 and are added/applied after f32 accumulation.
    """
    layers = params["layers"]
    D = layers[0]["wq"].shape[0]
    e = D // n_heads
    scale = 1.0 / math.sqrt(e)

    def per_layer(lp):
        wqkv = jnp.concatenate([lp["wq"] * scale, lp["wk"], lp["wv"]], axis=1)
        bqkv = jnp.concatenate([lp["bq"] * scale, lp["bk"], lp["bv"]])
        return dict(
            wqkv=wqkv.astype(jnp.bfloat16),                   # (D, 3D)
            bqkv=bqkv.reshape(1, 3 * D),                      # (1, 3D) f32
            wo=lp["wo"].reshape(n_heads, e, D).astype(jnp.bfloat16),  # (H,e,D)
            bo=lp["bo"].reshape(1, D),
            w1=lp["w1"].astype(jnp.bfloat16), b1=lp["b1"].reshape(1, -1),
            w2=lp["w2"].astype(jnp.bfloat16), b2=lp["b2"].reshape(1, D),
            g1=lp["g1"].reshape(1, D), be1=lp["be1"].reshape(1, D),
            g2=lp["g2"].reshape(1, D), be2=lp["be2"].reshape(1, D),
        )

    packed = [per_layer(lp) for lp in layers]
    kparams = {k: jnp.stack([p[k] for p in packed]) for k in packed[0]}
    kparams["ln_g"] = params["ln_g"].reshape(1, D)
    kparams["ln_b"] = params["ln_b"].reshape(1, D)
    return kparams


# ---------------------------------------------------------------------------
# Full Encoder forward
# ---------------------------------------------------------------------------
def encoder_forward(tokens, params, kparams, n_heads, d_model):
    B, S = tokens.shape
    # TODO(synk): embedding gather + positional-encoding add stay in plain JAX
    # (data-dependent gather; negligible cost, no clean win as a Pallas kernel).
    x = jnp.take(params["embedding"], tokens, axis=0)            # (B, S, D)
    x = x * math.sqrt(d_model) + params["pe"][:S][None, :, :]
    # pos-encoding dropout (p=0.1) is identity at inference time
    n_layers = kparams["wqkv"].shape[0]
    return encoder_pallas(x, kparams, n_layers, n_heads)


if __name__ == "__main__":
    # Encoder(input_size=50, d_model=32, n_heads=4, d_ff=64, n_layers=2)
    input_size, d_model, n_heads, d_ff, n_layers = 50, 32, 4, 64, 2
    B, S = 2, 8

    key = jax.random.PRNGKey(0)
    k_tok, k_par = jax.random.split(key)
    tokens = jax.random.randint(k_tok, (B, S), 0, input_size, dtype=jnp.int32)
    params = init_params(k_par, input_size, d_model, d_ff, n_layers)
    kparams = pack_params(params, n_heads)

    out = encoder_forward(tokens, params, kparams, n_heads, d_model)
    jax.block_until_ready(out)
    assert out.shape == (B, S, d_model) and out.dtype == jnp.float32
    assert bool(jnp.all(jnp.isfinite(out)))
    print("KERNEL_OK")
</pallas_src>

<mosaic_0001>
module attributes {stable_mosaic.version = 11 : i64} {
  func.func @encoder_kernel(%arg0: i32, %arg1: memref<1x8x32xf32, #tpu.memory_space<vmem>>, %arg2: memref<2x32x96xbf16, #tpu.memory_space<vmem>>, %arg3: memref<2x1x96xf32, #tpu.memory_space<vmem>>, %arg4: memref<2x4x8x32xbf16, #tpu.memory_space<vmem>>, %arg5: memref<2x1x32xf32, #tpu.memory_space<vmem>>, %arg6: memref<2x32x64xbf16, #tpu.memory_space<vmem>>, %arg7: memref<2x1x64xf32, #tpu.memory_space<vmem>>, %arg8: memref<2x64x32xbf16, #tpu.memory_space<vmem>>, %arg9: memref<2x1x32xf32, #tpu.memory_space<vmem>>, %arg10: memref<2x1x32xf32, #tpu.memory_space<vmem>>, %arg11: memref<2x1x32xf32, #tpu.memory_space<vmem>>, %arg12: memref<2x1x32xf32, #tpu.memory_space<vmem>>, %arg13: memref<2x1x32xf32, #tpu.memory_space<vmem>>, %arg14: memref<1x32xf32, #tpu.memory_space<vmem>>, %arg15: memref<1x32xf32, #tpu.memory_space<vmem>>, %arg16: memref<1x8x32xf32, #tpu.memory_space<vmem>>) attributes {dimension_semantics = [#tpu.dimension_semantics<parallel>], iteration_bounds = array<i64: 2>, scalar_prefetch = 0 : i64, scratch_operands = 0 : i64, tpu.core_type = #tpu.core_type<tc>, window_params = [{transform_indices = @transform_0, window_bounds = array<i64: 1, 8, 32>}, {pipeline_mode = #tpu.pipeline_mode<synchronous>, transform_indices = @transform_1, window_bounds = array<i64: 2, 32, 96>}, {pipeline_mode = #tpu.pipeline_mode<synchronous>, transform_indices = @transform_2, window_bounds = array<i64: 2, 1, 96>}, {pipeline_mode = #tpu.pipeline_mode<synchronous>, transform_indices = @transform_3, window_bounds = array<i64: 2, 4, 8, 32>}, {pipeline_mode = #tpu.pipeline_mode<synchronous>, transform_indices = @transform_4, window_bounds = array<i64: 2, 1, 32>}, {pipeline_mode = #tpu.pipeline_mode<synchronous>, transform_indices = @transform_5, window_bounds = array<i64: 2, 32, 64>}, {pipeline_mode = #tpu.pipeline_mode<synchronous>, transform_indices = @transform_6, window_bounds = array<i64: 2, 1, 64>}, {pipeline_mode = #tpu.pipeline_mode<synchronous>, transform_indices = @transform_7, window_bounds = array<i64: 2, 64, 32>}, {pipeline_mode = #tpu.pipeline_mode<synchronous>, transform_indices = @transform_8, window_bounds = array<i64: 2, 1, 32>}, {pipeline_mode = #tpu.pipeline_mode<synchronous>, transform_indices = @transform_9, window_bounds = array<i64: 2, 1, 32>}, {pipeline_mode = #tpu.pipeline_mode<synchronous>, transform_indices = @transform_10, window_bounds = array<i64: 2, 1, 32>}, {pipeline_mode = #tpu.pipeline_mode<synchronous>, transform_indices = @transform_11, window_bounds = array<i64: 2, 1, 32>}, {pipeline_mode = #tpu.pipeline_mode<synchronous>, transform_indices = @transform_12, window_bounds = array<i64: 2, 1, 32>}, {pipeline_mode = #tpu.pipeline_mode<synchronous>, transform_indices = @transform_13, window_bounds = array<i64: 1, 32>}, {pipeline_mode = #tpu.pipeline_mode<synchronous>, transform_indices = @transform_14, window_bounds = array<i64: 1, 32>}, {transform_indices = @transform_15, window_bounds = array<i64: 1, 8, 32>}]} {
    %c0 = arith.constant 0 : index
    %c0_0 = arith.constant 0 : index
    %c0_1 = arith.constant 0 : index
    %0 = vector.load %arg1[%c0, %c0_0, %c0_1] : memref<1x8x32xf32, #tpu.memory_space<vmem>>, vector<1x8x32xf32>
    %1 = vector.shape_cast %0 : vector<1x8x32xf32> to vector<8x32xf32>
    %2 = arith.truncf %1 : vector<8x32xf32> to vector<8x32xbf16>
    %c0_2 = arith.constant 0 : index
    %c0_3 = arith.constant 0 : index
    %c0_4 = arith.constant 0 : index
    %3 = vector.load %arg2[%c0_2, %c0_3, %c0_4] : memref<2x32x96xbf16, #tpu.memory_space<vmem>>, vector<1x32x96xbf16>
    %4 = vector.shape_cast %3 : vector<1x32x96xbf16> to vector<32x96xbf16>
    %cst = arith.constant dense<0.000000e+00> : vector<8x96xf32>
    %5 = tpu.matmul %2, %4, %cst {dimension_numbers = #tpu.dot_dimension_numbers<[1], [0], [0], [1], [0, 0, 1, 1], [], []>} : vector<8x32xbf16>, vector<32x96xbf16>, vector<8x96xf32> -> vector<8x96xf32>
    %c0_5 = arith.constant 0 : index
    %c0_6 = arith.constant 0 : index
    %c0_7 = arith.constant 0 : index
    %6 = vector.load %arg3[%c0_5, %c0_6, %c0_7] : memref<2x1x96xf32, #tpu.memory_space<vmem>>, vector<1x1x96xf32>
    %7 = vector.shape_cast %6 : vector<1x1x96xf32> to vector<1x96xf32>
    %8 = vector.broadcast %7 : vector<1x96xf32> to vector<8x96xf32>
    %9 = arith.addf %5, %8 : vector<8x96xf32>
    %10 = arith.truncf %9 : vector<8x96xf32> to vector<8x96xbf16>
    %11 = vector.extract_strided_slice %10 {offsets = [0, 0], sizes = [8, 8], strides = [1, 1]} : vector<8x96xbf16> to vector<8x8xbf16>
    %12 = vector.extract_strided_slice %10 {offsets = [0, 8], sizes = [8, 8], strides = [1, 1]} : vector<8x96xbf16> to vector<8x8xbf16>
    %13 = vector.extract_strided_slice %10 {offsets = [0, 16], sizes = [8, 8], strides = [1, 1]} : vector<8x96xbf16> to vector<8x8xbf16>
    %14 = vector.extract_strided_slice %10 {offsets = [0, 24], sizes = [8, 8], strides = [1, 1]} : vector<8x96xbf16> to vector<8x8xbf16>
    %15 = vector.shape_cast %11 : vector<8x8xbf16> to vector<1x8x8xbf16>
    %16 = vector.shape_cast %12 : vector<8x8xbf16> to vector<1x8x8xbf16>
    %17 = vector.shape_cast %13 : vector<8x8xbf16> to vector<1x8x8xbf16>
    %18 = vector.shape_cast %14 : vector<8x8xbf16> to vector<1x8x8xbf16>
    %19 = tpu.concatenate %15, %16, %17, %18 in 0 : vector<1x8x8xbf16>, vector<1x8x8xbf16>, vector<1x8x8xbf16>, vector<1x8x8xbf16> -> vector<4x8x8xbf16>
    %20 = vector.extract_strided_slice %10 {offsets = [0, 32], sizes = [8, 8], strides = [1, 1]} : vector<8x96xbf16> to vector<8x8xbf16>
    %21 = vector.extract_strided_slice %10 {offsets = [0, 40], sizes = [8, 8], strides = [1, 1]} : vector<8x96xbf16> to vector<8x8xbf16>
    %22 = vector.extract_strided_slice %10 {offsets = [0, 48], sizes = [8, 8], strides = [1, 1]} : vector<8x96xbf16> to vector<8x8xbf16>
    %23 = vector.extract_strided_slice %10 {offsets = [0, 56], sizes = [8, 8], strides = [1, 1]} : vector<8x96xbf16> to vector<8x8xbf16>
    %24 = vector.shape_cast %20 : vector<8x8xbf16> to vector<1x8x8xbf16>
    %25 = vector.shape_cast %21 : vector<8x8xbf16> to vector<1x8x8xbf16>
    %26 = vector.shape_cast %22 : vector<8x8xbf16> to vector<1x8x8xbf16>
    %27 = vector.shape_cast %23 : vector<8x8xbf16> to vector<1x8x8xbf16>
    %28 = tpu.concatenate %24, %25, %26, %27 in 0 : vector<1x8x8xbf16>, vector<1x8x8xbf16>, vector<1x8x8xbf16>, vector<1x8x8xbf16> -> vector<4x8x8xbf16>
    %29 = vector.extract_strided_slice %10 {offsets = [0, 64], sizes = [8, 8], strides = [1, 1]} : vector<8x96xbf16> to vector<8x8xbf16>
    %30 = vector.extract_strided_slice %10 {offsets = [0, 72], sizes = [8, 8], strides = [1, 1]} : vector<8x96xbf16> to vector<8x8xbf16>
    %31 = vector.extract_strided_slice %10 {offsets = [0, 80], sizes = [8, 8], strides = [1, 1]} : vector<8x96xbf16> to vector<8x8xbf16>
    %32 = vector.extract_strided_slice %10 {offsets = [0, 88], sizes = [8, 8], strides = [1, 1]} : vector<8x96xbf16> to vector<8x8xbf16>
    %33 = vector.shape_cast %29 : vector<8x8xbf16> to vector<1x8x8xbf16>
    %34 = vector.shape_cast %30 : vector<8x8xbf16> to vector<1x8x8xbf16>
    %35 = vector.shape_cast %31 : vector<8x8xbf16> to vector<1x8x8xbf16>
    %36 = vector.shape_cast %32 : vector<8x8xbf16> to vector<1x8x8xbf16>
    %37 = tpu.concatenate %33, %34, %35, %36 in 0 : vector<1x8x8xbf16>, vector<1x8x8xbf16>, vector<1x8x8xbf16>, vector<1x8x8xbf16> -> vector<4x8x8xbf16>
    "tpu.trace_start"() <{level = 10 : i32, message = "hqe,hke->hqk"}> : () -> ()
    %cst_8 = arith.constant dense<0.000000e+00> : vector<4x8x8xf32>
    %38 = tpu.matmul %19, %28, %cst_8 {dimension_numbers = #tpu.dot_dimension_numbers<[2], [2], [1], [1], [0, 0, 0, 1, 1, 1], [0], [0]>} : vector<4x8x8xbf16>, vector<4x8x8xbf16>, vector<4x8x8xf32> -> vector<4x8x8xf32>
    "tpu.trace_stop"() : () -> ()
    %cst_9 = arith.constant dense<0xFF800000> : vector<4x8xf32>
    %39 = vector.multi_reduction <maximumf>, %38, %cst_9 [2] : vector<4x8x8xf32> to vector<4x8xf32>
    %40 = vector.shape_cast %39 : vector<4x8xf32> to vector<4x8x1xf32>
    %41 = vector.broadcast %40 : vector<4x8x1xf32> to vector<4x8x8xf32>
    %42 = arith.subf %38, %41 : vector<4x8x8xf32>
    %43 = math.exp %42 : vector<4x8x8xf32>
    %cst_10 = arith.constant dense<0.000000e+00> : vector<4x8xf32>
    %44 = vector.multi_reduction <add>, %43, %cst_10 [2] : vector<4x8x8xf32> to vector<4x8xf32>
    %45 = vector.shape_cast %44 : vector<4x8xf32> to vector<4x8x1xf32>
    %46 = vector.broadcast %45 : vector<4x8x1xf32> to vector<4x8x8xf32>
    %47 = arith.divf %43, %46 : vector<4x8x8xf32>
    %48 = arith.truncf %47 : vector<4x8x8xf32> to vector<4x8x8xbf16>
    "tpu.trace_start"() <{level = 10 : i32, message = "hqk,hke->hqe"}> : () -> ()
    %cst_11 = arith.constant dense<0.000000e+00> : vector<4x8x8xf32>
    %49 = tpu.matmul %48, %37, %cst_11 {dimension_numbers = #tpu.dot_dimension_numbers<[2], [1], [1], [2], [0, 0, 0, 1, 1, 2], [0], [0]>} : vector<4x8x8xbf16>, vector<4x8x8xbf16>, vector<4x8x8xf32> -> vector<4x8x8xf32>
    "tpu.trace_stop"() : () -> ()
    %50 = arith.truncf %49 : vector<4x8x8xf32> to vector<4x8x8xbf16>
    %c0_12 = arith.constant 0 : index
    %c0_13 = arith.constant 0 : index
    %c0_14 = arith.constant 0 : index
    %c0_15 = arith.constant 0 : index
    %51 = vector.load %arg4[%c0_12, %c0_13, %c0_14, %c0_15] : memref<2x4x8x32xbf16, #tpu.memory_space<vmem>>, vector<1x4x8x32xbf16>
    %52 = vector.shape_cast %51 : vector<1x4x8x32xbf16> to vector<4x8x32xbf16>
    "tpu.trace_start"() <{level = 10 : i32, message = "hqe,hed->hqd"}> : () -> ()
    %cst_16 = arith.constant dense<0.000000e+00> : vector<4x8x32xf32>
    %53 = tpu.matmul %50, %52, %cst_16 {dimension_numbers = #tpu.dot_dimension_numbers<[2], [1], [1], [2], [0, 0, 0, 1, 1, 2], [0], [0]>} : vector<4x8x8xbf16>, vector<4x8x32xbf16>, vector<4x8x32xf32> -> vector<4x8x32xf32>
    "tpu.trace_stop"() : () -> ()
    %cst_17 = arith.constant dense<0.000000e+00> : vector<8x32xf32>
    %54 = vector.multi_reduction <add>, %53, %cst_17 [0] : vector<4x8x32xf32> to vector<8x32xf32>
    %c0_18 = arith.constant 0 : index
    %c0_19 = arith.constant 0 : index
    %c0_20 = arith.constant 0 : index
    %55 = vector.load %arg5[%c0_18, %c0_19, %c0_20] : memref<2x1x32xf32, #tpu.memory_space<vmem>>, vector<1x1x32xf32>
    %56 = vector.shape_cast %55 : vector<1x1x32xf32> to vector<1x32xf32>
    %57 = vector.broadcast %56 : vector<1x32xf32> to vector<8x32xf32>
    %58 = arith.addf %54, %57 : vector<8x32xf32>
    %59 = arith.addf %1, %58 : vector<8x32xf32>
    %c0_21 = arith.constant 0 : index
    %c0_22 = arith.constant 0 : index
    %c0_23 = arith.constant 0 : index
    %60 = vector.load %arg10[%c0_21, %c0_22, %c0_23] : memref<2x1x32xf32, #tpu.memory_space<vmem>>, vector<1x1x32xf32>
    %61 = vector.shape_cast %60 : vector<1x1x32xf32> to vector<1x32xf32>
    %c0_24 = arith.constant 0 : index
    %c0_25 = arith.constant 0 : index
    %c0_26 = arith.constant 0 : index
    %62 = vector.load %arg11[%c0_24, %c0_25, %c0_26] : memref<2x1x32xf32, #tpu.memory_space<vmem>>, vector<1x1x32xf32>
    %63 = vector.shape_cast %62 : vector<1x1x32xf32> to vector<1x32xf32>
    %cst_27 = arith.constant dense<0.000000e+00> : vector<8xf32>
    %64 = vector.multi_reduction <add>, %59, %cst_27 [1] : vector<8x32xf32> to vector<8xf32>
    %65 = vector.shape_cast %64 : vector<8xf32> to vector<8x1xf32>
    %cst_28 = arith.constant 3.200000e+01 : f32
    %66 = vector.broadcast %cst_28 : f32 to vector<8x1xf32>
    %67 = arith.divf %65, %66 : vector<8x1xf32>
    %68 = vector.broadcast %67 : vector<8x1xf32> to vector<8x32xf32>
    %69 = arith.subf %59, %68 : vector<8x32xf32>
    %70 = arith.mulf %69, %69 : vector<8x32xf32>
    %cst_29 = arith.constant dense<0.000000e+00> : vector<8xf32>
    %71 = vector.multi_reduction <add>, %70, %cst_29 [1] : vector<8x32xf32> to vector<8xf32>
    %72 = vector.shape_cast %71 : vector<8xf32> to vector<8x1xf32>
    %cst_30 = arith.constant 3.200000e+01 : f32
    %73 = vector.broadcast %cst_30 : f32 to vector<8x1xf32>
    %74 = arith.divf %72, %73 : vector<8x1xf32>
    %cst_31 = arith.constant 9.99999974E-6 : f32
    %75 = vector.broadcast %cst_31 : f32 to vector<8x1xf32>
    %76 = arith.addf %74, %75 : vector<8x1xf32>
    %77 = math.rsqrt %76 : vector<8x1xf32>
    %78 = vector.broadcast %77 : vector<8x1xf32> to vector<8x32xf32>
    %79 = arith.mulf %69, %78 : vector<8x32xf32>
    %80 = vector.broadcast %61 : vector<1x32xf32> to vector<8x32xf32>
    %81 = arith.mulf %79, %80 : vector<8x32xf32>
    %82 = vector.broadcast %63 : vector<1x32xf32> to vector<8x32xf32>
    %83 = arith.addf %81, %82 : vector<8x32xf32>
    %84 = arith.truncf %83 : vector<8x32xf32> to vector<8x32xbf16>
    %c0_32 = arith.constant 0 : index
    %c0_33 = arith.constant 0 : index
    %c0_34 = arith.constant 0 : index
    %85 = vector.load %arg6[%c0_32, %c0_33, %c0_34] : memref<2x32x64xbf16, #tpu.memory_space<vmem>>, vector<1x32x64xbf16>
    %86 = vector.shape_cast %85 : vector<1x32x64xbf16> to vector<32x64xbf16>
    %cst_35 = arith.constant dense<0.000000e+00> : vector<8x64xf32>
    %87 = tpu.matmul %84, %86, %cst_35 {dimension_numbers = #tpu.dot_dimension_numbers<[1], [0], [0], [1], [0, 0, 1, 1], [], []>} : vector<8x32xbf16>, vector<32x64xbf16>, vector<8x64xf32> -> vector<8x64xf32>
    %c0_36 = arith.constant 0 : index
    %c0_37 = arith.constant 0 : index
    %c0_38 = arith.constant 0 : index
    %88 = vector.load %arg7[%c0_36, %c0_37, %c0_38] : memref<2x1x64xf32, #tpu.memory_space<vmem>>, vector<1x1x64xf32>
    %89 = vector.shape_cast %88 : vector<1x1x64xf32> to vector<1x64xf32>
    %90 = vector.broadcast %89 : vector<1x64xf32> to vector<8x64xf32>
    %91 = arith.addf %87, %90 : vector<8x64xf32>
    %cst_39 = arith.constant 0.000000e+00 : f32
    %92 = vector.broadcast %cst_39 : f32 to vector<8x64xf32>
    %93 = arith.maximumf %91, %92 : vector<8x64xf32>
    %94 = arith.truncf %93 : vector<8x64xf32> to vector<8x64xbf16>
    %c0_40 = arith.constant 0 : index
    %c0_41 = arith.constant 0 : index
    %c0_42 = arith.constant 0 : index
    %95 = vector.load %arg8[%c0_40, %c0_41, %c0_42] : memref<2x64x32xbf16, #tpu.memory_space<vmem>>, vector<1x64x32xbf16>
    %96 = vector.shape_cast %95 : vector<1x64x32xbf16> to vector<64x32xbf16>
    %cst_43 = arith.constant dense<0.000000e+00> : vector<8x32xf32>
    %97 = tpu.matmul %94, %96, %cst_43 {dimension_numbers = #tpu.dot_dimension_numbers<[1], [0], [0], [1], [0, 0, 1, 1], [], []>} : vector<8x64xbf16>, vector<64x32xbf16>, vector<8x32xf32> -> vector<8x32xf32>
    %c0_44 = arith.constant 0 : index
    %c0_45 = arith.constant 0 : index
    %c0_46 = arith.constant 0 : index
    %98 = vector.load %arg9[%c0_44, %c0_45, %c0_46] : memref<2x1x32xf32, #tpu.memory_space<vmem>>, vector<1x1x32xf32>
    %99 = vector.shape_cast %98 : vector<1x1x32xf32> to vector<1x32xf32>
    %100 = vector.broadcast %99 : vector<1x32xf32> to vector<8x32xf32>
    %101 = arith.addf %97, %100 : vector<8x32xf32>
    %102 = arith.addf %83, %101 : vector<8x32xf32>
    %c0_47 = arith.constant 0 : index
    %c0_48 = arith.constant 0 : index
    %c0_49 = arith.constant 0 : index
    %103 = vector.load %arg12[%c0_47, %c0_48, %c0_49] : memref<2x1x32xf32, #tpu.memory_space<vmem>>, vector<1x1x32xf32>
    %104 = vector.shape_cast %103 : vector<1x1x32xf32> to vector<1x32xf32>
    %c0_50 = arith.constant 0 : index
    %c0_51 = arith.constant 0 : index
    %c0_52 = arith.constant 0 : index
    %105 = vector.load %arg13[%c0_50, %c0_51, %c0_52] : memref<2x1x32xf32, #tpu.memory_space<vmem>>, vector<1x1x32xf32>
    %106 = vector.shape_cast %105 : vector<1x1x32xf32> to vector<1x32xf32>
    %cst_53 = arith.constant dense<0.000000e+00> : vector<8xf32>
    %107 = vector.multi_reduction <add>, %102, %cst_53 [1] : vector<8x32xf32> to vector<8xf32>
    %108 = vector.shape_cast %107 : vector<8xf32> to vector<8x1xf32>
    %cst_54 = arith.constant 3.200000e+01 : f32
    %109 = vector.broadcast %cst_54 : f32 to vector<8x1xf32>
    %110 = arith.divf %108, %109 : vector<8x1xf32>
    %111 = vector.broadcast %110 : vector<8x1xf32> to vector<8x32xf32>
    %112 = arith.subf %102, %111 : vector<8x32xf32>
    %113 = arith.mulf %112, %112 : vector<8x32xf32>
    %cst_55 = arith.constant dense<0.000000e+00> : vector<8xf32>
    %114 = vector.multi_reduction <add>, %113, %cst_55 [1] : vector<8x32xf32> to vector<8xf32>
    %115 = vector.shape_cast %114 : vector<8xf32> to vector<8x1xf32>
    %cst_56 = arith.constant 3.200000e+01 : f32
    %116 = vector.broadcast %cst_56 : f32 to vector<8x1xf32>
    %117 = arith.divf %115, %116 : vector<8x1xf32>
    %cst_57 = arith.constant 9.99999974E-6 : f32
    %118 = vector.broadcast %cst_57 : f32 to vector<8x1xf32>
    %119 = arith.addf %117, %118 : vector<8x1xf32>
    %120 = math.rsqrt %119 : vector<8x1xf32>
    %121 = vector.broadcast %120 : vector<8x1xf32> to vector<8x32xf32>
    %122 = arith.mulf %112, %121 : vector<8x32xf32>
    %123 = vector.broadcast %104 : vector<1x32xf32> to vector<8x32xf32>
    %124 = arith.mulf %122, %123 : vector<8x32xf32>
    %125 = vector.broadcast %106 : vector<1x32xf32> to vector<8x32xf32>
    %126 = arith.addf %124, %125 : vector<8x32xf32>
    %127 = arith.truncf %126 : vector<8x32xf32> to vector<8x32xbf16>
    %c1 = arith.constant 1 : index
    %c0_58 = arith.constant 0 : index
    %c0_59 = arith.constant 0 : index
    %128 = vector.load %arg2[%c1, %c0_58, %c0_59] : memref<2x32x96xbf16, #tpu.memory_space<vmem>>, vector<1x32x96xbf16>
    %129 = vector.shape_cast %128 : vector<1x32x96xbf16> to vector<32x96xbf16>
    %cst_60 = arith.constant dense<0.000000e+00> : vector<8x96xf32>
    %130 = tpu.matmul %127, %129, %cst_60 {dimension_numbers = #tpu.dot_dimension_numbers<[1], [0], [0], [1], [0, 0, 1, 1], [], []>} : vector<8x32xbf16>, vector<32x96xbf16>, vector<8x96xf32> -> vector<8x96xf32>
    %c1_61 = arith.constant 1 : index
    %c0_62 = arith.constant 0 : index
    %c0_63 = arith.constant 0 : index
    %131 = vector.load %arg3[%c1_61, %c0_62, %c0_63] : memref<2x1x96xf32, #tpu.memory_space<vmem>>, vector<1x1x96xf32>
    %132 = vector.shape_cast %131 : vector<1x1x96xf32> to vector<1x96xf32>
    %133 = vector.broadcast %132 : vector<1x96xf32> to vector<8x96xf32>
    %134 = arith.addf %130, %133 : vector<8x96xf32>
    %135 = arith.truncf %134 : vector<8x96xf32> to vector<8x96xbf16>
    %136 = vector.extract_strided_slice %135 {offsets = [0, 0], sizes = [8, 8], strides = [1, 1]} : vector<8x96xbf16> to vector<8x8xbf16>
    %137 = vector.extract_strided_slice %135 {offsets = [0, 8], sizes = [8, 8], strides = [1, 1]} : vector<8x96xbf16> to vector<8x8xbf16>
    %138 = vector.extract_strided_slice %135 {offsets = [0, 16], sizes = [8, 8], strides = [1, 1]} : vector<8x96xbf16> to vector<8x8xbf16>
    %139 = vector.extract_strided_slice %135 {offsets = [0, 24], sizes = [8, 8], strides = [1, 1]} : vector<8x96xbf16> to vector<8x8xbf16>
    %140 = vector.shape_cast %136 : vector<8x8xbf16> to vector<1x8x8xbf16>
    %141 = vector.shape_cast %137 : vector<8x8xbf16> to vector<1x8x8xbf16>
    %142 = vector.shape_cast %138 : vector<8x8xbf16> to vector<1x8x8xbf16>
    %143 = vector.shape_cast %139 : vector<8x8xbf16> to vector<1x8x8xbf16>
    %144 = tpu.concatenate %140, %141, %142, %143 in 0 : vector<1x8x8xbf16>, vector<1x8x8xbf16>, vector<1x8x8xbf16>, vector<1x8x8xbf16> -> vector<4x8x8xbf16>
    %145 = vector.extract_strided_slice %135 {offsets = [0, 32], sizes = [8, 8], strides = [1, 1]} : vector<8x96xbf16> to vector<8x8xbf16>
    %146 = vector.extract_strided_slice %135 {offsets = [0, 40], sizes = [8, 8], strides = [1, 1]} : vector<8x96xbf16> to vector<8x8xbf16>
    %147 = vector.extract_strided_slice %135 {offsets = [0, 48], sizes = [8, 8], strides = [1, 1]} : vector<8x96xbf16> to vector<8x8xbf16>
    %148 = vector.extract_strided_slice %135 {offsets = [0, 56], sizes = [8, 8], strides = [1, 1]} : vector<8x96xbf16> to vector<8x8xbf16>
    %149 = vector.shape_cast %145 : vector<8x8xbf16> to vector<1x8x8xbf16>
    %150 = vector.shape_cast %146 : vector<8x8xbf16> to vector<1x8x8xbf16>
    %151 = vector.shape_cast %147 : vector<8x8xbf16> to vector<1x8x8xbf16>
    %152 = vector.shape_cast %148 : vector<8x8xbf16> to vector<1x8x8xbf16>
    %153 = tpu.concatenate %149, %150, %151, %152 in 0 : vector<1x8x8xbf16>, vector<1x8x8xbf16>, vector<1x8x8xbf16>, vector<1x8x8xbf16> -> vector<4x8x8xbf16>
    %154 = vector.extract_strided_slice %135 {offsets = [0, 64], sizes = [8, 8], strides = [1, 1]} : vector<8x96xbf16> to vector<8x8xbf16>
    %155 = vector.extract_strided_slice %135 {offsets = [0, 72], sizes = [8, 8], strides = [1, 1]} : vector<8x96xbf16> to vector<8x8xbf16>
    %156 = vector.extract_strided_slice %135 {offsets = [0, 80], sizes = [8, 8], strides = [1, 1]} : vector<8x96xbf16> to vector<8x8xbf16>
    %157 = vector.extract_strided_slice %135 {offsets = [0, 88], sizes = [8, 8], strides = [1, 1]} : vector<8x96xbf16> to vector<8x8xbf16>
    %158 = vector.shape_cast %154 : vector<8x8xbf16> to vector<1x8x8xbf16>
    %159 = vector.shape_cast %155 : vector<8x8xbf16> to vector<1x8x8xbf16>
    %160 = vector.shape_cast %156 : vector<8x8xbf16> to vector<1x8x8xbf16>
    %161 = vector.shape_cast %157 : vector<8x8xbf16> to vector<1x8x8xbf16>
    %162 = tpu.concatenate %158, %159, %160, %161 in 0 : vector<1x8x8xbf16>, vector<1x8x8xbf16>, vector<1x8x8xbf16>, vector<1x8x8xbf16> -> vector<4x8x8xbf16>
    "tpu.trace_start"() <{level = 10 : i32, message = "hqe,hke->hqk"}> : () -> ()
    %cst_64 = arith.constant dense<0.000000e+00> : vector<4x8x8xf32>
    %163 = tpu.matmul %144, %153, %cst_64 {dimension_numbers = #tpu.dot_dimension_numbers<[2], [2], [1], [1], [0, 0, 0, 1, 1, 1], [0], [0]>} : vector<4x8x8xbf16>, vector<4x8x8xbf16>, vector<4x8x8xf32> -> vector<4x8x8xf32>
    "tpu.trace_stop"() : () -> ()
    %cst_65 = arith.constant dense<0xFF800000> : vector<4x8xf32>
    %164 = vector.multi_reduction <maximumf>, %163, %cst_65 [2] : vector<4x8x8xf32> to vector<4x8xf32>
    %165 = vector.shape_cast %164 : vector<4x8xf32> to vector<4x8x1xf32>
    %166 = vector.broadcast %165 : vector<4x8x1xf32> to vector<4x8x8xf32>
    %167 = arith.subf %163, %166 : vector<4x8x8xf32>
    %168 = math.exp %167 : vector<4x8x8xf32>
    %cst_66 = arith.constant dense<0.000000e+00> : vector<4x8xf32>
    %169 = vector.multi_reduction <add>, %168, %cst_66 [2] : vector<4x8x8xf32> to vector<4x8xf32>
    %170 = vector.shape_cast %169 : vector<4x8xf32> to vector<4x8x1xf32>
    %171 = vector.broadcast %170 : vector<4x8x1xf32> to vector<4x8x8xf32>
    %172 = arith.divf %168, %171 : vector<4x8x8xf32>
    %173 = arith.truncf %172 : vector<4x8x8xf32> to vector<4x8x8xbf16>
    "tpu.trace_start"() <{level = 10 : i32, message = "hqk,hke->hqe"}> : () -> ()
    %cst_67 = arith.constant dense<0.000000e+00> : vector<4x8x8xf32>
    %174 = tpu.matmul %173, %162, %cst_67 {dimension_numbers = #tpu.dot_dimension_numbers<[2], [1], [1], [2], [0, 0, 0, 1, 1, 2], [0], [0]>} : vector<4x8x8xbf16>, vector<4x8x8xbf16>, vector<4x8x8xf32> -> vector<4x8x8xf32>
    "tpu.trace_stop"() : () -> ()
    %175 = arith.truncf %174 : vector<4x8x8xf32> to vector<4x8x8xbf16>
    %c1_68 = arith.constant 1 : index
    %c0_69 = arith.constant 0 : index
    %c0_70 = arith.constant 0 : index
    %c0_71 = arith.constant 0 : index
    %176 = vector.load %arg4[%c1_68, %c0_69, %c0_70, %c0_71] : memref<2x4x8x32xbf16, #tpu.memory_space<vmem>>, vector<1x4x8x32xbf16>
    %177 = vector.shape_cast %176 : vector<1x4x8x32xbf16> to vector<4x8x32xbf16>
    "tpu.trace_start"() <{level = 10 : i32, message = "hqe,hed->hqd"}> : () -> ()
    %cst_72 = arith.constant dense<0.000000e+00> : vector<4x8x32xf32>
    %178 = tpu.matmul %175, %177, %cst_72 {dimension_numbers = #tpu.dot_dimension_numbers<[2], [1], [1], [2], [0, 0, 0, 1, 1, 2], [0], [0]>} : vector<4x8x8xbf16>, vector<4x8x32xbf16>, vector<4x8x32xf32> -> vector<4x8x32xf32>
    "tpu.trace_stop"() : () -> ()
    %cst_73 = arith.constant dense<0.000000e+00> : vector<8x32xf32>
    %179 = vector.multi_reduction <add>, %178, %cst_73 [0] : vector<4x8x32xf32> to vector<8x32xf32>
    %c1_74 = arith.constant 1 : index
    %c0_75 = arith.constant 0 : index
    %c0_76 = arith.constant 0 : index
    %180 = vector.load %arg5[%c1_74, %c0_75, %c0_76] : memref<2x1x32xf32, #tpu.memory_space<vmem>>, vector<1x1x32xf32>
    %181 = vector.shape_cast %180 : vector<1x1x32xf32> to vector<1x32xf32>
    %182 = vector.broadcast %181 : vector<1x32xf32> to vector<8x32xf32>
    %183 = arith.addf %179, %182 : vector<8x32xf32>
    %184 = arith.addf %126, %183 : vector<8x32xf32>
    %c1_77 = arith.constant 1 : index
    %c0_78 = arith.constant 0 : index
    %c0_79 = arith.constant 0 : index
    %185 = vector.load %arg10[%c1_77, %c0_78, %c0_79] : memref<2x1x32xf32, #tpu.memory_space<vmem>>, vector<1x1x32xf32>
    %186 = vector.shape_cast %185 : vector<1x1x32xf32> to vector<1x32xf32>
    %c1_80 = arith.constant 1 : index
    %c0_81 = arith.constant 0 : index
    %c0_82 = arith.constant 0 : index
    %187 = vector.load %arg11[%c1_80, %c0_81, %c0_82] : memref<2x1x32xf32, #tpu.memory_space<vmem>>, vector<1x1x32xf32>
    %188 = vector.shape_cast %187 : vector<1x1x32xf32> to vector<1x32xf32>
    %cst_83 = arith.constant dense<0.000000e+00> : vector<8xf32>
    %189 = vector.multi_reduction <add>, %184, %cst_83 [1] : vector<8x32xf32> to vector<8xf32>
    %190 = vector.shape_cast %189 : vector<8xf32> to vector<8x1xf32>
    %cst_84 = arith.constant 3.200000e+01 : f32
    %191 = vector.broadcast %cst_84 : f32 to vector<8x1xf32>
    %192 = arith.divf %190, %191 : vector<8x1xf32>
    %193 = vector.broadcast %192 : vector<8x1xf32> to vector<8x32xf32>
    %194 = arith.subf %184, %193 : vector<8x32xf32>
    %195 = arith.mulf %194, %194 : vector<8x32xf32>
    %cst_85 = arith.constant dense<0.000000e+00> : vector<8xf32>
    %196 = vector.multi_reduction <add>, %195, %cst_85 [1] : vector<8x32xf32> to vector<8xf32>
    %197 = vector.shape_cast %196 : vector<8xf32> to vector<8x1xf32>
    %cst_86 = arith.constant 3.200000e+01 : f32
    %198 = vector.broadcast %cst_86 : f32 to vector<8x1xf32>
    %199 = arith.divf %197, %198 : vector<8x1xf32>
    %cst_87 = arith.constant 9.99999974E-6 : f32
    %200 = vector.broadcast %cst_87 : f32 to vector<8x1xf32>
    %201 = arith.addf %199, %200 : vector<8x1xf32>
    %202 = math.rsqrt %201 : vector<8x1xf32>
    %203 = vector.broadcast %202 : vector<8x1xf32> to vector<8x32xf32>
    %204 = arith.mulf %194, %203 : vector<8x32xf32>
    %205 = vector.broadcast %186 : vector<1x32xf32> to vector<8x32xf32>
    %206 = arith.mulf %204, %205 : vector<8x32xf32>
    %207 = vector.broadcast %188 : vector<1x32xf32> to vector<8x32xf32>
    %208 = arith.addf %206, %207 : vector<8x32xf32>
    %209 = arith.truncf %208 : vector<8x32xf32> to vector<8x32xbf16>
    %c1_88 = arith.constant 1 : index
    %c0_89 = arith.constant 0 : index
    %c0_90 = arith.constant 0 : index
    %210 = vector.load %arg6[%c1_88, %c0_89, %c0_90] : memref<2x32x64xbf16, #tpu.memory_space<vmem>>, vector<1x32x64xbf16>
    %211 = vector.shape_cast %210 : vector<1x32x64xbf16> to vector<32x64xbf16>
    %cst_91 = arith.constant dense<0.000000e+00> : vector<8x64xf32>
    %212 = tpu.matmul %209, %211, %cst_91 {dimension_numbers = #tpu.dot_dimension_numbers<[1], [0], [0], [1], [0, 0, 1, 1], [], []>} : vector<8x32xbf16>, vector<32x64xbf16>, vector<8x64xf32> -> vector<8x64xf32>
    %c1_92 = arith.constant 1 : index
    %c0_93 = arith.constant 0 : index
    %c0_94 = arith.constant 0 : index
    %213 = vector.load %arg7[%c1_92, %c0_93, %c0_94] : memref<2x1x64xf32, #tpu.memory_space<vmem>>, vector<1x1x64xf32>
    %214 = vector.shape_cast %213 : vector<1x1x64xf32> to vector<1x64xf32>
    %215 = vector.broadcast %214 : vector<1x64xf32> to vector<8x64xf32>
    %216 = arith.addf %212, %215 : vector<8x64xf32>
    %cst_95 = arith.constant 0.000000e+00 : f32
    %217 = vector.broadcast %cst_95 : f32 to vector<8x64xf32>
    %218 = arith.maximumf %216, %217 : vector<8x64xf32>
    %219 = arith.truncf %218 : vector<8x64xf32> to vector<8x64xbf16>
    %c1_96 = arith.constant 1 : index
    %c0_97 = arith.constant 0 : index
    %c0_98 = arith.constant 0 : index
    %220 = vector.load %arg8[%c1_96, %c0_97, %c0_98] : memref<2x64x32xbf16, #tpu.memory_space<vmem>>, vector<1x64x32xbf16>
    %221 = vector.shape_cast %220 : vector<1x64x32xbf16> to vector<64x32xbf16>
    %cst_99 = arith.constant dense<0.000000e+00> : vector<8x32xf32>
    %222 = tpu.matmul %219, %221, %cst_99 {dimension_numbers = #tpu.dot_dimension_numbers<[1], [0], [0], [1], [0, 0, 1, 1], [], []>} : vector<8x64xbf16>, vector<64x32xbf16>, vector<8x32xf32> -> vector<8x32xf32>
    %c1_100 = arith.constant 1 : index
    %c0_101 = arith.constant 0 : index
    %c0_102 = arith.constant 0 : index
    %223 = vector.load %arg9[%c1_100, %c0_101, %c0_102] : memref<2x1x32xf32, #tpu.memory_space<vmem>>, vector<1x1x32xf32>
    %224 = vector.shape_cast %223 : vector<1x1x32xf32> to vector<1x32xf32>
    %225 = vector.broadcast %224 : vector<1x32xf32> to vector<8x32xf32>
    %226 = arith.addf %222, %225 : vector<8x32xf32>
    %227 = arith.addf %208, %226 : vector<8x32xf32>
    %c1_103 = arith.constant 1 : index
    %c0_104 = arith.constant 0 : index
    %c0_105 = arith.constant 0 : index
    %228 = vector.load %arg12[%c1_103, %c0_104, %c0_105] : memref<2x1x32xf32, #tpu.memory_space<vmem>>, vector<1x1x32xf32>
    %229 = vector.shape_cast %228 : vector<1x1x32xf32> to vector<1x32xf32>
    %c1_106 = arith.constant 1 : index
    %c0_107 = arith.constant 0 : index
    %c0_108 = arith.constant 0 : index
    %230 = vector.load %arg13[%c1_106, %c0_107, %c0_108] : memref<2x1x32xf32, #tpu.memory_space<vmem>>, vector<1x1x32xf32>
    %231 = vector.shape_cast %230 : vector<1x1x32xf32> to vector<1x32xf32>
    %cst_109 = arith.constant dense<0.000000e+00> : vector<8xf32>
    %232 = vector.multi_reduction <add>, %227, %cst_109 [1] : vector<8x32xf32> to vector<8xf32>
    %233 = vector.shape_cast %232 : vector<8xf32> to vector<8x1xf32>
    %cst_110 = arith.constant 3.200000e+01 : f32
    %234 = vector.broadcast %cst_110 : f32 to vector<8x1xf32>
    %235 = arith.divf %233, %234 : vector<8x1xf32>
    %236 = vector.broadcast %235 : vector<8x1xf32> to vector<8x32xf32>
    %237 = arith.subf %227, %236 : vector<8x32xf32>
    %238 = arith.mulf %237, %237 : vector<8x32xf32>
    %cst_111 = arith.constant dense<0.000000e+00> : vector<8xf32>
    %239 = vector.multi_reduction <add>, %238, %cst_111 [1] : vector<8x32xf32> to vector<8xf32>
    %240 = vector.shape_cast %239 : vector<8xf32> to vector<8x1xf32>
    %cst_112 = arith.constant 3.200000e+01 : f32
    %241 = vector.broadcast %cst_112 : f32 to vector<8x1xf32>
    %242 = arith.divf %240, %241 : vector<8x1xf32>
    %cst_113 = arith.constant 9.99999974E-6 : f32
    %243 = vector.broadcast %cst_113 : f32 to vector<8x1xf32>
    %244 = arith.addf %242, %243 : vector<8x1xf32>
    %245 = math.rsqrt %244 : vector<8x1xf32>
    %246 = vector.broadcast %245 : vector<8x1xf32> to vector<8x32xf32>
    %247 = arith.mulf %237, %246 : vector<8x32xf32>
    %248 = vector.broadcast %229 : vector<1x32xf32> to vector<8x32xf32>
    %249 = arith.mulf %247, %248 : vector<8x32xf32>
    %250 = vector.broadcast %231 : vector<1x32xf32> to vector<8x32xf32>
    %251 = arith.addf %249, %250 : vector<8x32xf32>
    %c0_114 = arith.constant 0 : index
    %c0_115 = arith.constant 0 : index
    %252 = vector.load %arg14[%c0_114, %c0_115] : memref<1x32xf32, #tpu.memory_space<vmem>>, vector<1x32xf32>
    %c0_116 = arith.constant 0 : index
    %c0_117 = arith.constant 0 : index
    %253 = vector.load %arg15[%c0_116, %c0_117] : memref<1x32xf32, #tpu.memory_space<vmem>>, vector<1x32xf32>
    %cst_118 = arith.constant dense<0.000000e+00> : vector<8xf32>
    %254 = vector.multi_reduction <add>, %251, %cst_118 [1] : vector<8x32xf32> to vector<8xf32>
    %255 = vector.shape_cast %254 : vector<8xf32> to vector<8x1xf32>
    %cst_119 = arith.constant 3.200000e+01 : f32
    %256 = vector.broadcast %cst_119 : f32 to vector<8x1xf32>
    %257 = arith.divf %255, %256 : vector<8x1xf32>
    %258 = vector.broadcast %257 : vector<8x1xf32> to vector<8x32xf32>
    %259 = arith.subf %251, %258 : vector<8x32xf32>
    %260 = arith.mulf %259, %259 : vector<8x32xf32>
    %cst_120 = arith.constant dense<0.000000e+00> : vector<8xf32>
    %261 = vector.multi_reduction <add>, %260, %cst_120 [1] : vector<8x32xf32> to vector<8xf32>
    %262 = vector.shape_cast %261 : vector<8xf32> to vector<8x1xf32>
    %cst_121 = arith.constant 3.200000e+01 : f32
    %263 = vector.broadcast %cst_121 : f32 to vector<8x1xf32>
    %264 = arith.divf %262, %263 : vector<8x1xf32>
    %cst_122 = arith.constant 9.99999974E-6 : f32
    %265 = vector.broadcast %cst_122 : f32 to vector<8x1xf32>
    %266 = arith.addf %264, %265 : vector<8x1xf32>
    %267 = math.rsqrt %266 : vector<8x1xf32>
    %268 = vector.broadcast %267 : vector<8x1xf32> to vector<8x32xf32>
    %269 = arith.mulf %259, %268 : vector<8x32xf32>
    %270 = vector.broadcast %252 : vector<1x32xf32> to vector<8x32xf32>
    %271 = arith.mulf %269, %270 : vector<8x32xf32>
    %272 = vector.broadcast %253 : vector<1x32xf32> to vector<8x32xf32>
    %273 = arith.addf %271, %272 : vector<8x32xf32>
    %c0_123 = arith.constant 0 : index
    %c0_124 = arith.constant 0 : index
    %c0_125 = arith.constant 0 : index
    %274 = vector.load %arg16[%c0_123, %c0_124, %c0_125] : memref<1x8x32xf32, #tpu.memory_space<vmem>>, vector<1x8x32xf32>
    %275 = vector.shape_cast %274 : vector<1x8x32xf32> to vector<8x32xf32>
    %276 = vector.shape_cast %273 : vector<8x32xf32> to vector<1x8x32xf32>
    tpu.vector_store %arg16[%c0_123, %c0_124, %c0_125], %276 {strides = array<i32>} : memref<1x8x32xf32, #tpu.memory_space<vmem>>, vector<1x8x32xf32>,
    return
  }
  func.func @transform_0(%arg0: i32) -> (i32, i32, i32) {
    %c0_i32 = arith.constant 0 : i32
    %c0_i32_0 = arith.constant 0 : i32
    %c0_i32_1 = arith.constant 0 : i32
    return %arg0, %c0_i32, %c0_i32_0 : i32, i32, i32
  }
  func.func @transform_1(%arg0: i32) -> (i32, i32, i32) {
    %c0_i32 = arith.constant 0 : i32
    %c0_i32_0 = arith.constant 0 : i32
    %c0_i32_1 = arith.constant 0 : i32
    %c0_i32_2 = arith.constant 0 : i32
    return %c0_i32, %c0_i32_0, %c0_i32_1 : i32, i32, i32
  }
  func.func @transform_2(%arg0: i32) -> (i32, i32, i32) {
    %c0_i32 = arith.constant 0 : i32
    %c0_i32_0 = arith.constant 0 : i32
    %c0_i32_1 = arith.constant 0 : i32
    %c0_i32_2 = arith.constant 0 : i32
    return %c0_i32, %c0_i32_0, %c0_i32_1 : i32, i32, i32
  }
  func.func @transform_3(%arg0: i32) -> (i32, i32, i32, i32) {
    %c0_i32 = arith.constant 0 : i32
    %c0_i32_0 = arith.constant 0 : i32
    %c0_i32_1 = arith.constant 0 : i32
    %c0_i32_2 = arith.constant 0 : i32
    %c0_i32_3 = arith.constant 0 : i32
    return %c0_i32, %c0_i32_0, %c0_i32_1, %c0_i32_2 : i32, i32, i32, i32
  }
  func.func @transform_4(%arg0: i32) -> (i32, i32, i32) {
    %c0_i32 = arith.constant 0 : i32
    %c0_i32_0 = arith.constant 0 : i32
    %c0_i32_1 = arith.constant 0 : i32
    %c0_i32_2 = arith.constant 0 : i32
    return %c0_i32, %c0_i32_0, %c0_i32_1 : i32, i32, i32
  }
  func.func @transform_5(%arg0: i32) -> (i32, i32, i32) {
    %c0_i32 = arith.constant 0 : i32
    %c0_i32_0 = arith.constant 0 : i32
    %c0_i32_1 = arith.constant 0 : i32
    %c0_i32_2 = arith.constant 0 : i32
    return %c0_i32, %c0_i32_0, %c0_i32_1 : i32, i32, i32
  }
  func.func @transform_6(%arg0: i32) -> (i32, i32, i32) {
    %c0_i32 = arith.constant 0 : i32
    %c0_i32_0 = arith.constant 0 : i32
    %c0_i32_1 = arith.constant 0 : i32
    %c0_i32_2 = arith.constant 0 : i32
    return %c0_i32, %c0_i32_0, %c0_i32_1 : i32, i32, i32
  }
  func.func @transform_7(%arg0: i32) -> (i32, i32, i32) {
    %c0_i32 = arith.constant 0 : i32
    %c0_i32_0 = arith.constant 0 : i32
    %c0_i32_1 = arith.constant 0 : i32
    %c0_i32_2 = arith.constant 0 : i32
    return %c0_i32, %c0_i32_0, %c0_i32_1 : i32, i32, i32
  }
  func.func @transform_8(%arg0: i32) -> (i32, i32, i32) {
    %c0_i32 = arith.constant 0 : i32
    %c0_i32_0 = arith.constant 0 : i32
    %c0_i32_1 = arith.constant 0 : i32
    %c0_i32_2 = arith.constant 0 : i32
    return %c0_i32, %c0_i32_0, %c0_i32_1 : i32, i32, i32
  }
  func.func @transform_9(%arg0: i32) -> (i32, i32, i32) {
    %c0_i32 = arith.constant 0 : i32
    %c0_i32_0 = arith.constant 0 : i32
    %c0_i32_1 = arith.constant 0 : i32
    %c0_i32_2 = arith.constant 0 : i32
    return %c0_i32, %c0_i32_0, %c0_i32_1 : i32, i32, i32
  }
  func.func @transform_10(%arg0: i32) -> (i32, i32, i32) {
    %c0_i32 = arith.constant 0 : i32
    %c0_i32_0 = arith.constant 0 : i32
    %c0_i32_1 = arith.constant 0 : i32
    %c0_i32_2 = arith.constant 0 : i32
    return %c0_i32, %c0_i32_0, %c0_i32_1 : i32, i32, i32
  }
  func.func @transform_11(%arg0: i32) -> (i32, i32, i32) {
    %c0_i32 = arith.constant 0 : i32
    %c0_i32_0 = arith.constant 0 : i32
    %c0_i32_1 = arith.constant 0 : i32
    %c0_i32_2 = arith.constant 0 : i32
    return %c0_i32, %c0_i32_0, %c0_i32_1 : i32, i32, i32
  }
  func.func @transform_12(%arg0: i32) -> (i32, i32, i32) {
    %c0_i32 = arith.constant 0 : i32
    %c0_i32_0 = arith.constant 0 : i32
    %c0_i32_1 = arith.constant 0 : i32
    %c0_i32_2 = arith.constant 0 : i32
    return %c0_i32, %c0_i32_0, %c0_i32_1 : i32, i32, i32
  }
  func.func @transform_13(%arg0: i32) -> (i32, i32) {
    %c0_i32 = arith.constant 0 : i32
    %c0_i32_0 = arith.constant 0 : i32
    %c0_i32_1 = arith.constant 0 : i32
    return %c0_i32, %c0_i32_0 : i32, i32
  }
  func.func @transform_14(%arg0: i32) -> (i32, i32) {
    %c0_i32 = arith.constant 0 : i32
    %c0_i32_0 = arith.constant 0 : i32
    %c0_i32_1 = arith.constant 0 : i32
    return %c0_i32, %c0_i32_0 : i32, i32
  }
  func.func @transform_15(%arg0: i32) -> (i32, i32, i32) {
    %c0_i32 = arith.constant 0 : i32
    %c0_i32_0 = arith.constant 0 : i32
    %c0_i32_1 = arith.constant 0 : i32
    return %arg0, %c0_i32, %c0_i32_0 : i32, i32, i32
  }
}

</mosaic_0001>

<llo_original>
// kernel: tpu_custom_call.1
$region0: #{tpu_custom_call.1}
  #allocation0 [shape = 'u32[]', space=smem, size = 0x4, offset = 0x4, fixed_abs, tag = 'smem constant byte address 0x4 - core index']
  #allocation1 [shape = 'u32[72,128]{1,0:T(1,128)}', space=vmem, size = 0x9000, scoped, tag = 'internal scratch']
  %s0 = inlined_call_operand.hbm [shape: f32[2,8,32], index: 0, kind: input, shape index: {}]
  %s1 = inlined_call_operand.vmem [shape: bf16[2,32,96], index: 1, kind: input, shape index: {}]
  %s2 = inlined_call_operand.hbm [shape: f32[2,1,96], index: 2, kind: input, shape index: {}]
  %s3 = inlined_call_operand.vmem [shape: bf16[2,4,8,32], index: 3, kind: input, shape index: {}]
  %s4 = inlined_call_operand.vmem [shape: f32[2,1,32], index: 4, kind: input, shape index: {}]
  %s5 = inlined_call_operand.vmem [shape: bf16[2,32,64], index: 5, kind: input, shape index: {}]
  %s6 = inlined_call_operand.vmem [shape: f32[2,1,64], index: 6, kind: input, shape index: {}]
  %s7 = inlined_call_operand.vmem [shape: bf16[2,64,32], index: 7, kind: input, shape index: {}]
  %s8 = inlined_call_operand.vmem [shape: f32[2,1,32], index: 8, kind: input, shape index: {}]
  %s9 = inlined_call_operand.hbm [shape: f32[2,1,32], index: 9, kind: input, shape index: {}]
  %s10 = inlined_call_operand.vmem [shape: f32[2,1,32], index: 10, kind: input, shape index: {}]
  %s11 = inlined_call_operand.hbm [shape: f32[2,1,32], index: 11, kind: input, shape index: {}]
  %s12 = inlined_call_operand.vmem [shape: f32[2,1,32], index: 12, kind: input, shape index: {}]
  %s13 = inlined_call_operand.vmem [shape: f32[1,32], index: 13, kind: input, shape index: {}]
  %s14 = inlined_call_operand.vmem [shape: f32[1,32], index: 14, kind: input, shape index: {}]
  %s15 = inlined_call_operand.hbm [shape: f32[2,8,32], index: 15, kind: output, shape index: {}]
  %s16 = sld [smem:[#allocation0]]
  $region109: #{tpu_custom_call.1} parent=0
    _
  %s18 = ssub.s32 1, %s16
  %s19 = scalar_select 0, %s18, %s16
  $region1: #{tpu_custom_call.1} parent=0
    #allocation2 [shape = 'u8[8192]{0}', space=vmem, size = 0x2000, scoped, tag = 'input window, operand 0']
    #allocation3 [shape = 's32[2]{0}', space=sflag, size = 0x8, scoped, tag = 'scoped memory for tpu_custom_call.1']
    #allocation4 [shape = 's32[2]{0}', space=sflag, size = 0x8, scoped, tag = 'scoped memory for tpu_custom_call.1']
    #allocation5 [shape = 'u8[1024]{0}', space=vmem, size = 0x400, scoped, tag = 'input window, operand 2, single buffered']
    #allocation6 [shape = 's32[1]{0}', space=sflag, size = 0x4, scoped, tag = 'scoped memory for tpu_custom_call.1']
    #allocation7 [shape = 'u8[1024]{0}', space=vmem, size = 0x400, scoped, tag = 'input window, operand 9, single buffered']
    #allocation8 [shape = 'u8[1024]{0}', space=vmem, size = 0x400, scoped, tag = 'input window, operand 11, single buffered']
    #allocation9 [shape = 's32[1]{0}', space=sflag, size = 0x4, scoped, tag = 'scoped memory for tpu_custom_call.1']
    #allocation10 [shape = 'u8[8192]{0}', space=vmem, size = 0x2000, scoped, tag = 'output window, operand 0']
    %20 = vsyncpa [#allocation3], 0
    %s21 = scalar_lea.sflag [#allocation3], 1
    %22 = vsyncpa %s21, 0
    %23 = vsyncpa [#allocation6], 0
    %24 = vsyncpa [#allocation9], 0
    %25 = vsyncpa [#allocation4], 0
    %s26 = scalar_lea.sflag [#allocation4], 1
    %27 = vsyncpa %s26, 0
    loop: start=0, step=1, limit=4
    $region2: #{tpu_custom_call.1} parent=1 // loop_pre_header
      _
    $region3: #{tpu_custom_call.1} parent=1 // loop_header
      %s29 = sphi 0, %s33
      %p30 = scmp.ge.s32.totalorder %s29, 4
      %s39 = sphi 0, %s41
      %s42 = sphi 0, %s39
      %s43 = sphi 0, %s42
      %s59 = sphi 0, %s43
      %s63 = sphi 0, %s63
      %s65 = sphi 0, %s63
      %s66 = sphi 0, %s65
      %s80 = sphi 0, %s66
      %s84 = sphi 0, %s84
      %s86 = sphi 0, %s84
      %s87 = sphi 0, %s86
      %s101 = sphi 0, %s87
      %s105 = sphi 0, %s105
      %s107 = sphi 0, %s105
      %s108 = sphi 0, %s107
      %s122 = sphi 0, %s108
      %s126 = sphi 0, %s126
      %s128 = sphi 0, %s126
      %s129 = sphi 0, %s128
      %s143 = sphi 0, %s129
      %s147 = sphi 0, %s147
      %s149 = sphi 0, %s147
      %s150 = sphi 0, %s149
      %s164 = sphi 0, %s150
      %s168 = sphi 0, %s168
      %s170 = sphi 0, %s168
      %s171 = sphi 0, %s170
      %s185 = sphi 0, %s171
      %s189 = sphi 0, %s189
      %s191 = sphi 0, %s189
      %s192 = sphi 0, %s191
      %s206 = sphi 0, %s192
      %s210 = sphi 0, %s210
      %s212 = sphi 0, %s210
      %s213 = sphi 0, %s212
      %s227 = sphi 0, %s213
      %s231 = sphi 0, %s231
      %s233 = sphi 0, %s231
      %s234 = sphi 0, %s233
      %s248 = sphi 0, %s234
      %s252 = sphi 0, %s252
      %s254 = sphi 0, %s252
      %s255 = sphi 0, %s254
      %s269 = sphi 0, %s255
      %s273 = sphi 0, %s273
      %s275 = sphi 0, %s273
      %s276 = sphi 0, %s275
      %s290 = sphi 0, %s276
      %s294 = sphi 0, %s294
      %s296 = sphi 0, %s294
      %s297 = sphi 0, %s296
      %s311 = sphi 0, %s297
      %s315 = sphi 0, %s315
      %s317 = sphi 0, %s315
      %s318 = sphi 0, %s317
      %s332 = sphi 0, %s318
      %s336 = sphi 0, %s336
      %s338 = sphi 0, %s336
      %s339 = sphi 0, %s338
      %s353 = sphi 0, %s339
      %s359 = sphi 0, %s361
      %s362 = sphi 0, %s359
      %s363 = sphi 0, %s362
      %s379 = sphi 0, %s363
    $region4: #{tpu_custom_call.1} parent=1 // loop_header_branch
      %32 = sbr.rel (%p30) target = $region8
    $region5: #{tpu_custom_call.1} parent=1 // loop_body
      %s34 = ssub.s32 %s29, 1
      %s35 = ssub.s32 %s29, 2
      %s36 = sadd.s32 %s29, 1
      %s37 = ssub.s32 %s29, %s36
      %p38 = scmp.eq.s32.totalorder %s37, 0
      %s40 = sadd.s32 %s39, 1
      %s41 = scalar_select %p38, %s39, %s40
      %p44 = pneg %p38
      %p45 = scmp.eq.s32.totalorder %s29, 1
      %p46 = por %p44, %p45
      %p47 = scmp.ne.s32.totalorder %s39, %s42
      %p48 = scmp.eq.s32.totalorder %s29, 0
      %p49 = por %p47, %p48
      %p50 = scmp.ne.s32.totalorder %s39, %s42
      %p51 = scmp.eq.s32.totalorder %s34, 1
      %p52 = por %p50, %p51
      %p53 = scmp.ne.s32.totalorder %s42, %s43
      %p54 = scmp.eq.s32.totalorder %s34, 0
      %p55 = por %p53, %p54
      %p56 = scmp.ne.s32.totalorder %s42, %s43
      %p57 = scmp.eq.s32.totalorder %s35, 1
      %p58 = por %p56, %p57
      %p60 = scmp.ne.s32.totalorder %s43, %s59
      %p61 = scmp.eq.s32.totalorder %s35, 0
      %p62 = por %p60, %p61
      %s64 = sadd.s32 %s63, 1
      %p67 = scmp.eq.s32.totalorder %s29, 1
      %p68 = scmp.ne.s32.totalorder %s63, %s65
      %p69 = scmp.eq.s32.totalorder %s29, 0
      %p70 = por %p68, %p69
      %p71 = scmp.ne.s32.totalorder %s63, %s65
      %p72 = scmp.eq.s32.totalorder %s34, 1
      %p73 = por %p71, %p72
      %p74 = scmp.ne.s32.totalorder %s65, %s66
      %p75 = scmp.eq.s32.totalorder %s34, 0
      %p76 = por %p74, %p75
      %p77 = scmp.ne.s32.totalorder %s65, %s66
      %p78 = scmp.eq.s32.totalorder %s35, 1
      %p79 = por %p77, %p78
      %p81 = scmp.ne.s32.totalorder %s66, %s80
      %p82 = scmp.eq.s32.totalorder %s35, 0
      %p83 = por %p81, %p82
      %s85 = sadd.s32 %s84, 1
      %p88 = scmp.eq.s32.totalorder %s29, 1
      %p89 = scmp.ne.s32.totalorder %s84, %s86
      %p90 = scmp.eq.s32.totalorder %s29, 0
      %p91 = por %p89, %p90
      %p92 = scmp.ne.s32.totalorder %s84, %s86
      %p93 = scmp.eq.s32.totalorder %s34, 1
      %p94 = por %p92, %p93
      %p95 = scmp.ne.s32.totalorder %s86, %s87
      %p96 = scmp.eq.s32.totalorder %s34, 0
      %p97 = por %p95, %p96
      %p98 = scmp.ne.s32.totalorder %s86, %s87
      %p99 = scmp.eq.s32.totalorder %s35, 1
      %p100 = por %p98, %p99
      %p102 = scmp.ne.s32.totalorder %s87, %s101
      %p103 = scmp.eq.s32.totalorder %s35, 0
      %p104 = por %p102, %p103
      %s106 = sadd.s32 %s105, 1
      %p109 = scmp.eq.s32.totalorder %s29, 1
      %p110 = scmp.ne.s32.totalorder %s105, %s107
      %p111 = scmp.eq.s32.totalorder %s29, 0
      %p112 = por %p110, %p111
      %p113 = scmp.ne.s32.totalorder %s105, %s107
      %p114 = scmp.eq.s32.totalorder %s34, 1
      %p115 = por %p113, %p114
      %p116 = scmp.ne.s32.totalorder %s107, %s108
      %p117 = scmp.eq.s32.totalorder %s34, 0
      %p118 = por %p116, %p117
      %p119 = scmp.ne.s32.totalorder %s107, %s108
      %p120 = scmp.eq.s32.totalorder %s35, 1
      %p121 = por %p119, %p120
      %p123 = scmp.ne.s32.totalorder %s108, %s122
      %p124 = scmp.eq.s32.totalorder %s35, 0
      %p125 = por %p123, %p124
      %s127 = sadd.s32 %s126, 1
      %p130 = scmp.eq.s32.totalorder %s29, 1
      %p131 = scmp.ne.s32.totalorder %s126, %s128
      %p132 = scmp.eq.s32.totalorder %s29, 0
      %p133 = por %p131, %p132
      %p134 = scmp.ne.s32.totalorder %s126, %s128
      %p135 = scmp.eq.s32.totalorder %s34, 1
      %p136 = por %p134, %p135
      %p137 = scmp.ne.s32.totalorder %s128, %s129
      %p138 = scmp.eq.s32.totalorder %s34, 0
      %p139 = por %p137, %p138
      %p140 = scmp.ne.s32.totalorder %s128, %s129
      %p141 = scmp.eq.s32.totalorder %s35, 1
      %p142 = por %p140, %p141
      %p144 = scmp.ne.s32.totalorder %s129, %s143
      %p145 = scmp.eq.s32.totalorder %s35, 0
      %p146 = por %p144, %p145
      %s148 = sadd.s32 %s147, 1
      %p151 = scmp.eq.s32.totalorder %s29, 1
      %p152 = scmp.ne.s32.totalorder %s147, %s149
      %p153 = scmp.eq.s32.totalorder %s29, 0
      %p154 = por %p152, %p153
      %p155 = scmp.ne.s32.totalorder %s147, %s149
      %p156 = scmp.eq.s32.totalorder %s34, 1
      %p157 = por %p155, %p156
      %p158 = scmp.ne.s32.totalorder %s149, %s150
      %p159 = scmp.eq.s32.totalorder %s34, 0
      %p160 = por %p158, %p159
      %p161 = scmp.ne.s32.totalorder %s149, %s150
      %p162 = scmp.eq.s32.totalorder %s35, 1
      %p163 = por %p161, %p162
      %p165 = scmp.ne.s32.totalorder %s150, %s164
      %p166 = scmp.eq.s32.totalorder %s35, 0
      %p167 = por %p165, %p166
      %s169 = sadd.s32 %s168, 1
      %p172 = scmp.eq.s32.totalorder %s29, 1
      %p173 = scmp.ne.s32.totalorder %s168, %s170
      %p174 = scmp.eq.s32.totalorder %s29, 0
      %p175 = por %p173, %p174
      %p176 = scmp.ne.s32.totalorder %s168, %s170
      %p177 = scmp.eq.s32.totalorder %s34, 1
      %p178 = por %p176, %p177
      %p179 = scmp.ne.s32.totalorder %s170, %s171
      %p180 = scmp.eq.s32.totalorder %s34, 0
      %p181 = por %p179, %p180
      %p182 = scmp.ne.s32.totalorder %s170, %s171
      %p183 = scmp.eq.s32.totalorder %s35, 1
      %p184 = por %p182, %p183
      %p186 = scmp.ne.s32.totalorder %s171, %s185
      %p187 = scmp.eq.s32.totalorder %s35, 0
      %p188 = por %p186, %p187
      %s190 = sadd.s32 %s189, 1
      %p193 = scmp.eq.s32.totalorder %s29, 1
      %p194 = scmp.ne.s32.totalorder %s189, %s191
      %p195 = scmp.eq.s32.totalorder %s29, 0
      %p196 = por %p194, %p195
      %p197 = scmp.ne.s32.totalorder %s189, %s191
      %p198 = scmp.eq.s32.totalorder %s34, 1
      %p199 = por %p197, %p198
      %p200 = scmp.ne.s32.totalorder %s191, %s192
      %p201 = scmp.eq.s32.totalorder %s34, 0
      %p202 = por %p200, %p201
      %p203 = scmp.ne.s32.totalorder %s191, %s192
      %p204 = scmp.eq.s32.totalorder %s35, 1
      %p205 = por %p203, %p204
      %p207 = scmp.ne.s32.totalorder %s192, %s206
      %p208 = scmp.eq.s32.totalorder %s35, 0
      %p209 = por %p207, %p208
      %s211 = sadd.s32 %s210, 1
      %p214 = scmp.eq.s32.totalorder %s29, 1
      %p215 = scmp.ne.s32.totalorder %s210, %s212
      %p216 = scmp.eq.s32.totalorder %s29, 0
      %p217 = por %p215, %p216
      %p218 = scmp.ne.s32.totalorder %s210, %s212
      %p219 = scmp.eq.s32.totalorder %s34, 1
      %p220 = por %p218, %p219
      %p221 = scmp.ne.s32.totalorder %s212, %s213
      %p222 = scmp.eq.s32.totalorder %s34, 0
      %p223 = por %p221, %p222
      %p224 = scmp.ne.s32.totalorder %s212, %s213
      %p225 = scmp.eq.s32.totalorder %s35, 1
      %p226 = por %p224, %p225
      %p228 = scmp.ne.s32.totalorder %s213, %s227
      %p229 = scmp.eq.s32.totalorder %s35, 0
      %p230 = por %p228, %p229
      %s232 = sadd.s32 %s231, 1
      %p235 = scmp.eq.s32.totalorder %s29, 1
      %p236 = scmp.ne.s32.totalorder %s231, %s233
      %p237 = scmp.eq.s32.totalorder %s29, 0
      %p238 = por %p236, %p237
      %p239 = scmp.ne.s32.totalorder %s231, %s233
      %p240 = scmp.eq.s32.totalorder %s34, 1
      %p241 = por %p239, %p240
      %p242 = scmp.ne.s32.totalorder %s233, %s234
      %p243 = scmp.eq.s32.totalorder %s34, 0
      %p244 = por %p242, %p243
      %p245 = scmp.ne.s32.totalorder %s233, %s234
      %p246 = scmp.eq.s32.totalorder %s35, 1
      %p247 = por %p245, %p246
      %p249 = scmp.ne.s32.totalorder %s234, %s248
      %p250 = scmp.eq.s32.totalorder %s35, 0
      %p251 = por %p249, %p250
      %s253 = sadd.s32 %s252, 1
      %p256 = scmp.eq.s32.totalorder %s29, 1
      %p257 = scmp.ne.s32.totalorder %s252, %s254
      %p258 = scmp.eq.s32.totalorder %s29, 0
      %p259 = por %p257, %p258
      %p260 = scmp.ne.s32.totalorder %s252, %s254
      %p261 = scmp.eq.s32.totalorder %s34, 1
      %p262 = por %p260, %p261
      %p263 = scmp.ne.s32.totalorder %s254, %s255
      %p264 = scmp.eq.s32.totalorder %s34, 0
      %p265 = por %p263, %p264
      %p266 = scmp.ne.s32.totalorder %s254, %s255
      %p267 = scmp.eq.s32.totalorder %s35, 1
      %p268 = por %p266, %p267
      %p270 = scmp.ne.s32.totalorder %s255, %s269
      %p271 = scmp.eq.s32.totalorder %s35, 0
      %p272 = por %p270, %p271
      %s274 = sadd.s32 %s273, 1
      %p277 = scmp.eq.s32.totalorder %s29, 1
      %p278 = scmp.ne.s32.totalorder %s273, %s275
      %p279 = scmp.eq.s32.totalorder %s29, 0
      %p280 = por %p278, %p279
      %p281 = scmp.ne.s32.totalorder %s273, %s275
      %p282 = scmp.eq.s32.totalorder %s34, 1
      %p283 = por %p281, %p282
      %p284 = scmp.ne.s32.totalorder %s275, %s276
      %p285 = scmp.eq.s32.totalorder %s34, 0
      %p286 = por %p284, %p285
      %p287 = scmp.ne.s32.totalorder %s275, %s276
      %p288 = scmp.eq.s32.totalorder %s35, 1
      %p289 = por %p287, %p288
      %p291 = scmp.ne.s32.totalorder %s276, %s290
      %p292 = scmp.eq.s32.totalorder %s35, 0
      %p293 = por %p291, %p292
      %s295 = sadd.s32 %s294, 1
      %p298 = scmp.eq.s32.totalorder %s29, 1
      %p299 = scmp.ne.s32.totalorder %s294, %s296
      %p300 = scmp.eq.s32.totalorder %s29, 0
      %p301 = por %p299, %p300
      %p302 = scmp.ne.s32.totalorder %s294, %s296
      %p303 = scmp.eq.s32.totalorder %s34, 1
      %p304 = por %p302, %p303
      %p305 = scmp.ne.s32.totalorder %s296, %s297
      %p306 = scmp.eq.s32.totalorder %s34, 0
      %p307 = por %p305, %p306
      %p308 = scmp.ne.s32.totalorder %s296, %s297
      %p309 = scmp.eq.s32.totalorder %s35, 1
      %p310 = por %p308, %p309
      %p312 = scmp.ne.s32.totalorder %s297, %s311
      %p313 = scmp.eq.s32.totalorder %s35, 0
      %p314 = por %p312, %p313
      %s316 = sadd.s32 %s315, 1
      %p319 = scmp.eq.s32.totalorder %s29, 1
      %p320 = scmp.ne.s32.totalorder %s315, %s317
      %p321 = scmp.eq.s32.totalorder %s29, 0
      %p322 = por %p320, %p321
      %p323 = scmp.ne.s32.totalorder %s315, %s317
      %p324 = scmp.eq.s32.totalorder %s34, 1
      %p325 = por %p323, %p324
      %p326 = scmp.ne.s32.totalorder %s317, %s318
      %p327 = scmp.eq.s32.totalorder %s34, 0
      %p328 = por %p326, %p327
      %p329 = scmp.ne.s32.totalorder %s317, %s318
      %p330 = scmp.eq.s32.totalorder %s35, 1
      %p331 = por %p329, %p330
      %p333 = scmp.ne.s32.totalorder %s318, %s332
      %p334 = scmp.eq.s32.totalorder %s35, 0
      %p335 = por %p333, %p334
      %s337 = sadd.s32 %s336, 1
      %p340 = scmp.eq.s32.totalorder %s29, 1
      %p341 = scmp.ne.s32.totalorder %s336, %s338
      %p342 = scmp.eq.s32.totalorder %s29, 0
      %p343 = por %p341, %p342
      %p344 = scmp.ne.s32.totalorder %s336, %s338
      %p345 = scmp.eq.s32.totalorder %s34, 1
      %p346 = por %p344, %p345
      %p347 = scmp.ne.s32.totalorder %s338, %s339
      %p348 = scmp.eq.s32.totalorder %s34, 0
      %p349 = por %p347, %p348
      %p350 = scmp.ne.s32.totalorder %s338, %s339
      %p351 = scmp.eq.s32.totalorder %s35, 1
      %p352 = por %p350, %p351
      %p354 = scmp.ne.s32.totalorder %s339, %s353
      %p355 = scmp.eq.s32.totalorder %s35, 0
      %p356 = por %p354, %p355
      %s357 = ssub.s32 %s29, %s36
      %p358 = scmp.eq.s32.totalorder %s357, 0
      %s360 = sadd.s32 %s359, 1
      %s361 = scalar_select %p358, %s359, %s360
      %p364 = pneg %p358
      %p365 = scmp.eq.s32.totalorder %s29, 1
      %p366 = por %p364, %p365
      %p367 = scmp.ne.s32.totalorder %s359, %s362
      %p368 = scmp.eq.s32.totalorder %s29, 0
      %p369 = por %p367, %p368
      %p370 = scmp.ne.s32.totalorder %s359, %s362
      %p371 = scmp.eq.s32.totalorder %s34, 1
      %p372 = por %p370, %p371
      %p373 = scmp.ne.s32.totalorder %s362, %s363
      %p374 = scmp.eq.s32.totalorder %s34, 0
      %p375 = por %p373, %p374
      %p376 = scmp.ne.s32.totalorder %s362, %s363
      %p377 = scmp.eq.s32.totalorder %s35, 1
      %p378 = por %p376, %p377
      %p380 = scmp.ne.s32.totalorder %s363, %s379
      %p381 = scmp.eq.s32.totalorder %s35, 0
      %p382 = por %p380, %p381
      %p383 = scmp.le.s32.totalorder 1, %s29
      %p384 = scmp.lt.s32.totalorder %s29, 3
      %p385 = pnand %p383, %p384
      %p386 = pneg %p385
      // Predicated region
      $region9: #{tpu_custom_call.1} parent=5 // pred_check
        _
      $region10: #{tpu_custom_call.1} parent=5 // pred_check_branch
        %388 = sbr.rel (%p385) target = $region12
      $region11: #{tpu_custom_call.1} parent=5 // pred_region
        %s389 = ssub.s32 %s29, 1
        // Predicated region
        $region13: #{tpu_custom_call.1} parent=11 // pred_check
          %p390 = pneg %p76
        $region14: #{tpu_custom_call.1} parent=11 // pred_check_branch
          %392 = sbr.rel (%p390) target = $region16
        $region15: #{tpu_custom_call.1} parent=11 // pred_region
          _
        $region16: #{tpu_custom_call.1} parent=11 // pred_fallthru
          _
        // Predicated region
        $region17: #{tpu_custom_call.1} parent=11 // pred_check
          %p393 = pneg %p97
        $region18: #{tpu_custom_call.1} parent=11 // pred_check_branch
          %395 = sbr.rel (%p393) target = $region20
        $region19: #{tpu_custom_call.1} parent=11 // pred_region
          %397 = vsyncadd [#allocation6], 0
          %s398 = sshll.u32 %s2, 4
          %s399 = int_to_ptr.hbm [resolvable:$true] %s398
          %s400 = sshll.u32 [#allocation5], 4
          %s401 = int_to_ptr.vmem [resolvable:$true] %s400
          %406 = dma.hbm_to_vmem [thread:$0]  %s399, 32, %s401, [#allocation6], 16, 16, 1
        $region20: #{tpu_custom_call.1} parent=11 // pred_fallthru
          _
        // Predicated region
        $region21: #{tpu_custom_call.1} parent=11 // pred_check
          %p407 = pneg %p118
        $region22: #{tpu_custom_call.1} parent=11 // pred_check_branch
          %409 = sbr.rel (%p407) target = $region24
        $region23: #{tpu_custom_call.1} parent=11 // pred_region
          _
        $region24: #{tpu_custom_call.1} parent=11 // pred_fallthru
          _
        // Predicated region
        $region25: #{tpu_custom_call.1} parent=11 // pred_check
          %p410 = pneg %p139
        $region26: #{tpu_custom_call.1} parent=11 // pred_check_branch
          %412 = sbr.rel (%p410) target = $region28
        $region27: #{tpu_custom_call.1} parent=11 // pred_region
          _
        $region28: #{tpu_custom_call.1} parent=11 // pred_fallthru
          _
        // Predicated region
        $region29: #{tpu_custom_call.1} parent=11 // pred_check
          %p413 = pneg %p160
        $region30: #{tpu_custom_call.1} parent=11 // pred_check_branch
          %415 = sbr.rel (%p413) target = $region32
        $region31: #{tpu_custom_call.1} parent=11 // pred_region
          _
        $region32: #{tpu_custom_call.1} parent=11 // pred_fallthru
          _
        // Predicated region
        $region33: #{tpu_custom_call.1} parent=11 // pred_check
          %p416 = pneg %p181
        $region34: #{tpu_custom_call.1} parent=11 // pred_check_branch
          %418 = sbr.rel (%p416) target = $region36
        $region35: #{tpu_custom_call.1} parent=11 // pred_region
          _
        $region36: #{tpu_custom_call.1} parent=11 // pred_fallthru
          _
        // Predicated region
        $region37: #{tpu_custom_call.1} parent=11 // pred_check
          %p419 = pneg %p202
        $region38: #{tpu_custom_call.1} parent=11 // pred_check_branch
          %421 = sbr.rel (%p419) target = $region40
        $region39: #{tpu_custom_call.1} parent=11 // pred_region
          _
        $region40: #{tpu_custom_call.1} parent=11 // pred_fallthru
          _
        // Predicated region
        $region41: #{tpu_custom_call.1} parent=11 // pred_check
          %p422 = pneg %p223
        $region42: #{tpu_custom_call.1} parent=11 // pred_check_branch
          %424 = sbr.rel (%p422) target = $region44
        $region43: #{tpu_custom_call.1} parent=11 // pred_region
          _
        $region44: #{tpu_custom_call.1} parent=11 // pred_fallthru
          _
        // Predicated region
        $region45: #{tpu_custom_call.1} parent=11 // pred_check
          %p425 = pneg %p244
        $region46: #{tpu_custom_call.1} parent=11 // pred_check_branch
          %427 = sbr.rel (%p425) target = $region48
        $region47: #{tpu_custom_call.1} parent=11 // pred_region
          %429 = vsyncadd [#allocation6], 0
          %s430 = sshll.u32 %s9, 4
          %s431 = int_to_ptr.hbm [resolvable:$true] %s430
          %s432 = sshll.u32 [#allocation7], 4
          %s433 = int_to_ptr.vmem [resolvable:$true] %s432
          %438 = dma.hbm_to_vmem [thread:$0]  %s431, 32, %s433, [#allocation6], 16, 16, 1
        $region48: #{tpu_custom_call.1} parent=11 // pred_fallthru
          _
        // Predicated region
        $region49: #{tpu_custom_call.1} parent=11 // pred_check
          %p439 = pneg %p265
        $region50: #{tpu_custom_call.1} parent=11 // pred_check_branch
          %441 = sbr.rel (%p439) target = $region52
        $region51: #{tpu_custom_call.1} parent=11 // pred_region
          _
        $region52: #{tpu_custom_call.1} parent=11 // pred_fallthru
          _
        // Predicated region
        $region53: #{tpu_custom_call.1} parent=11 // pred_check
          %p442 = pneg %p286
        $region54: #{tpu_custom_call.1} parent=11 // pred_check_branch
          %444 = sbr.rel (%p442) target = $region56
        $region55: #{tpu_custom_call.1} parent=11 // pred_region
          %446 = vsyncadd [#allocation9], 0
          %s447 = sshll.u32 %s11, 4
          %s448 = int_to_ptr.hbm [resolvable:$true] %s447
          %s449 = sshll.u32 [#allocation8], 4
          %s450 = int_to_ptr.vmem [resolvable:$true] %s449
          %455 = dma.hbm_to_vmem [thread:$0]  %s448, 32, %s450, [#allocation9], 16, 16, 1
        $region56: #{tpu_custom_call.1} parent=11 // pred_fallthru
          _
        // Predicated region
        $region57: #{tpu_custom_call.1} parent=11 // pred_check
          %p456 = pneg %p307
        $region58: #{tpu_custom_call.1} parent=11 // pred_check_branch
          %458 = sbr.rel (%p456) target = $region60
        $region59: #{tpu_custom_call.1} parent=11 // pred_region
          _
        $region60: #{tpu_custom_call.1} parent=11 // pred_fallthru
          _
        // Predicated region
        $region61: #{tpu_custom_call.1} parent=11 // pred_check
          %p459 = pneg %p328
        $region62: #{tpu_custom_call.1} parent=11 // pred_check_branch
          %461 = sbr.rel (%p459) target = $region64
        $region63: #{tpu_custom_call.1} parent=11 // pred_region
          _
        $region64: #{tpu_custom_call.1} parent=11 // pred_fallthru
          _
        // Predicated region
        $region65: #{tpu_custom_call.1} parent=11 // pred_check
          %p462 = pneg %p349
        $region66: #{tpu_custom_call.1} parent=11 // pred_check_branch
          %464 = sbr.rel (%p462) target = $region68
        $region67: #{tpu_custom_call.1} parent=11 // pred_region
          _
        $region68: #{tpu_custom_call.1} parent=11 // pred_fallthru
          _
      $region12: #{tpu_custom_call.1} parent=5 // pred_fallthru
        _
      %p465 = scmp.lt.s32.totalorder %s29, 2
      // Predicated region
      $region69: #{tpu_custom_call.1} parent=5 // pred_check
        %p466 = pneg %p465
      $region70: #{tpu_custom_call.1} parent=5 // pred_check_branch
        %468 = sbr.rel (%p466) target = $region72
      $region71: #{tpu_custom_call.1} parent=5 // pred_region
        // Predicated region
        $region73: #{tpu_custom_call.1} parent=71 // pred_check
          %p469 = pneg %p49
        $region74: #{tpu_custom_call.1} parent=71 // pred_check_branch
          %471 = sbr.rel (%p469) target = $region76
        $region75: #{tpu_custom_call.1} parent=71 // pred_region
          %s472 = sand.u32 %s39, 1
          %s473 = scalar_lea.sflag [#allocation3], %s472
          %s474 = sand.u32 %s39, 1
          %s475 = smul.addr %s474, 8
          %s476 = scalar_lea.vmem [#allocation2], %s475
          %478 = vsyncadd %s473, 0
          %s479 = smul.addr %s29, 8
          %s480 = scalar_lea.hbm %s0, %s479
          %s482 = sshll.u32 %s480, 4
          %s483 = int_to_ptr.hbm [resolvable:$true] %s482
          %s484 = sshll.u32 %s476, 4
          %s485 = int_to_ptr.vmem [resolvable:$true] %s484
          %487 = dma.hbm_to_vmem [thread:$0]  %s483, 128, %s485, %s473
        $region76: #{tpu_custom_call.1} parent=71 // pred_fallthru
          _
      $region72: #{tpu_custom_call.1} parent=5 // pred_fallthru
        _
      %p488 = scmp.le.s32.totalorder 1, %s29
      %p489 = scmp.lt.s32.totalorder %s29, 3
      %p490 = pnand %p488, %p489
      %p491 = pneg %p490
      // Predicated region
      $region77: #{tpu_custom_call.1} parent=5 // pred_check
        _
      $region78: #{tpu_custom_call.1} parent=5 // pred_check_branch
        %493 = sbr.rel (%p490) target = $region80
      $region79: #{tpu_custom_call.1} parent=5 // pred_region
        %s494 = ssub.s32 %s29, 1
        %s495 = sand.u32 %s42, 1
        %s496 = scalar_lea.sflag [#allocation3], %s495
        %s497 = sand.u32 %s42, 1
        %s498 = smul.addr %s497, 8
        %s499 = scalar_lea.vmem [#allocation2], %s498
        // Predicated region
        $region81: #{tpu_custom_call.1} parent=79 // pred_check
          %p500 = pneg %p55
        $region82: #{tpu_custom_call.1} parent=79 // pred_check_branch
          %502 = sbr.rel (%p500) target = $region84
        $region83: #{tpu_custom_call.1} parent=79 // pred_region
          %504 = dma.done %s496, 128
        $region84: #{tpu_custom_call.1} parent=79 // pred_fallthru
          _
        // Predicated region
        $region85: #{tpu_custom_call.1} parent=79 // pred_check
          %p505 = pneg %p97
        $region86: #{tpu_custom_call.1} parent=79 // pred_check_branch
          %507 = sbr.rel (%p505) target = $region88
        $region87: #{tpu_custom_call.1} parent=79 // pred_region
          %509 = dma.done [#allocation6], 32
        $region88: #{tpu_custom_call.1} parent=79 // pred_fallthru
          _
        // Predicated region
        $region89: #{tpu_custom_call.1} parent=79 // pred_check
          %p510 = pneg %p244
        $region90: #{tpu_custom_call.1} parent=79 // pred_check_branch
          %512 = sbr.rel (%p510) target = $region92
        $region91: #{tpu_custom_call.1} parent=79 // pred_region
          %514 = dma.done [#allocation6], 32
        $region92: #{tpu_custom_call.1} parent=79 // pred_fallthru
          _
        // Predicated region
        $region93: #{tpu_custom_call.1} parent=79 // pred_check
          %p515 = pneg %p286
        $region94: #{tpu_custom_call.1} parent=79 // pred_check_branch
          %517 = sbr.rel (%p515) target = $region96
        $region95: #{tpu_custom_call.1} parent=79 // pred_region
          %519 = dma.done [#allocation9], 32
        $region96: #{tpu_custom_call.1} parent=79 // pred_fallthru
          _
        %s520 = sand.u32 %s42, 1
        %s521 = scalar_lea.sflag [#allocation3], %s520
        %s522 = sand.u32 %s42, 1
        %s523 = smul.addr %s522, 8
        %s524 = scalar_lea.vmem [#allocation2], %s523
        %p525 = pneg %p55
        %p526 = pneg %p52
        %p527 = pneg %p76
        %p528 = pneg %p73
        %p529 = pneg %p97
        %p530 = pneg %p94
        %p531 = pneg %p118
        %p532 = pneg %p115
        %p533 = pneg %p139
        %p534 = pneg %p136
        %p535 = pneg %p160
        %p536 = pneg %p157
        %p537 = pneg %p181
        %p538 = pneg %p178
        %p539 = pneg %p202
        %p540 = pneg %p199
        %p541 = pneg %p223
        %p542 = pneg %p220
        %p543 = pneg %p244
        %p544 = pneg %p241
        %p545 = pneg %p265
        %p546 = pneg %p262
        %p547 = pneg %p286
        %p548 = pneg %p283
        %p549 = pneg %p307
        %p550 = pneg %p304
        %p551 = pneg %p328
        %p552 = pneg %p325
        %p553 = pneg %p349
        %p554 = pneg %p346
        %p555 = pneg %p375
        %p556 = pneg %p372
        %s557 = sand.u32 %s362, 1
        %s558 = scalar_lea.sflag [#allocation4], %s557
        %s559 = sand.u32 %s362, 1
        %s560 = smul.addr %s559, 8
        %s561 = scalar_lea.vmem [#allocation10], %s560
        %v563 = vld [vmem:[%s499] sm:$0xff]
        %v564 = vpack.c.bf16 %v563, %v563
        %v565 = vld [vmem:[%s1] sm:$0xf]
        %v566 = vld [vmem:[%s1 + $0x4] sm:$0xf]
        %v567 = vld [vmem:[%s1 + $0x8] sm:$0xf]
        %v568 = vld [vmem:[%s1 + $0xc] sm:$0xf]
        %v569 = vld [vmem:[#allocation5] sm:$0x1]
        %v571 = vperm.slane %v569, 0
        %v577 = vunpack.c.l.b16 %v565
        %v578 = vunpack.c.l.b16 %v566
        %v579 = vunpack.c.l.b16 %v567
        %v580 = vunpack.c.l.b16 %v568
        %v581 = vpack.c.b16 %v578, %v577
        %v582 = vpack.c.b16 %v580, %v579
        %vm585 = vcmask 261120
        %v587 = vsel %vm585, %v564, 0
        %589 = vmatpush.bf16.msra.mxu0 0
        %590 = vmatpush.bf16.msra.mxu0 0
        %591 = vmatpush.bf16.msra.mxu0 0
        %592 = vmatpush.bf16.msra.mxu0 0
        %593 = vmatpush.bf16.msra.mxu0 0
        %594 = vmatpush.bf16.msra.mxu0 0
        %595 = vmatpush.bf16.msra.mxu0 %v582
        %596 = vmatpush.bf16.msra.mxu0 %v581
        %597 = vmatmul.bf16.gmra.mxu0 %v587
        %v598 = vpop.f32.mrf.mxu0
        %v599 = vadd.f32 %v571, %v598
        %v600 = vpop.f32.mrf.mxu0
        %601 = vdwg.mxu0
        %v602 = vpack.c.bf16 %v599, %v599
        %604 = vrot.lane.b32.xlu0 %v602, 120
        %v605 = vpop.permute.xlu0 %604
        %606 = vrot.lane.b32.xlu0 %v602, 112
        %v607 = vpop.permute.xlu0 %606
        %608 = vrot.lane.b32.xlu0 %v602, 104
        %v609 = vpop.permute.xlu0 %608
        %v610 = vunpack.c.l.b16 %v602
        %v611 = vpack.c.b16 %v610, %v610
        %612 = vrot.lane.b32.xlu0 %v611, 96
        %v613 = vpop.permute.xlu0 %612
        %vm614 = vcmask 64512
        %v616 = vsel %vm614, %v602, 0
        %v619 = vsel %vm614, %v613, 0
        %621 = vmatpush.bf16.xpose.msra.mxu0 0
        %622 = vmatpush.bf16.xpose.msra.mxu0 0
        %623 = vmatpush.bf16.xpose.msra.mxu0 0
        %624 = vmatpush.bf16.xpose.msra.mxu0 0
        %625 = vmatpush.bf16.xpose.msra.mxu0 0
        %626 = vmatpush.bf16.xpose.msra.mxu0 0
        %627 = vmatpush.bf16.xpose.msra.mxu0 0
        %628 = vmatpush.bf16.xpose.msra.mxu0 %v619
        %629 = vmatmul.bf16.gmra.mxu0 %v616
        %v630 = vpop.f32.mrf.mxu0
        %v631 = vadd.f32 0.0, %v630
        %v632 = vpop.f32.mrf.mxu0
        %633 = vdwg.mxu0
        %v634 = vunpack.c.l.b16 %v605
        %v635 = vpack.c.b16 %v634, %v634
        %636 = vrot.lane.b32.xlu0 %v635, 96
        %v637 = vpop.permute.xlu0 %636
        %v639 = vsel %vm614, %v605, 0
        %v642 = vsel %vm614, %v637, 0
        %644 = vmatpush.bf16.xpose.msra.mxu0 0
        %645 = vmatpush.bf16.xpose.msra.mxu0 0
        %646 = vmatpush.bf16.xpose.msra.mxu0 0
        %647 = vmatpush.bf16.xpose.msra.mxu0 0
        %648 = vmatpush.bf16.xpose.msra.mxu0 0
        %649 = vmatpush.bf16.xpose.msra.mxu0 0
        %650 = vmatpush.bf16.xpose.msra.mxu0 0
        %651 = vmatpush.bf16.xpose.msra.mxu0 %v642
        %652 = vmatmul.bf16.gmra.mxu0 %v639
        %v653 = vpop.f32.mrf.mxu0
        %v654 = vadd.f32 0.0, %v653
        %v655 = vpop.f32.mrf.mxu0
        %656 = vdwg.mxu0
        %v657 = vunpack.c.l.b16 %v607
        %v658 = vpack.c.b16 %v657, %v657
        %659 = vrot.lane.b32.xlu0 %v658, 96
        %v660 = vpop.permute.xlu0 %659
        %v662 = vsel %vm614, %v607, 0
        %v665 = vsel %vm614, %v660, 0
        %667 = vmatpush.bf16.xpose.msra.mxu0 0
        %668 = vmatpush.bf16.xpose.msra.mxu0 0
        %669 = vmatpush.bf16.xpose.msra.mxu0 0
        %670 = vmatpush.bf16.xpose.msra.mxu0 0
        %671 = vmatpush.bf16.xpose.msra.mxu0 0
        %672 = vmatpush.bf16.xpose.msra.mxu0 0
        %673 = vmatpush.bf16.xpose.msra.mxu0 0
        %674 = vmatpush.bf16.xpose.msra.mxu0 %v665
        %675 = vmatmul.bf16.gmra.mxu0 %v662
        %v676 = vpop.f32.mrf.mxu0
        %v677 = vadd.f32 0.0, %v676
        %v678 = vpop.f32.mrf.mxu0
        %679 = vdwg.mxu0
        %v680 = vunpack.c.l.b16 %v609
        %v681 = vpack.c.b16 %v680, %v680
        %682 = vrot.lane.b32.xlu0 %v681, 96
        %v683 = vpop.permute.xlu0 %682
        %v685 = vsel %vm614, %v609, 0
        %v688 = vsel %vm614, %v683, 0
        %690 = vmatpush.bf16.xpose.msra.mxu0 0
        %691 = vmatpush.bf16.xpose.msra.mxu0 0
        %692 = vmatpush.bf16.xpose.msra.mxu0 0
        %693 = vmatpush.bf16.xpose.msra.mxu0 0
        %694 = vmatpush.bf16.xpose.msra.mxu0 0
        %695 = vmatpush.bf16.xpose.msra.mxu0 0
        %696 = vmatpush.bf16.xpose.msra.mxu0 0
        %697 = vmatpush.bf16.xpose.msra.mxu0 %v688
        %698 = vmatmul.bf16.gmra.mxu0 %v685
        %v699 = vpop.f32.mrf.mxu0
        %v700 = vadd.f32 0.0, %v699
        %v701 = vpop.f32.mrf.mxu0
        %702 = vdwg.mxu0
        %v703 = vsel %vm614, %v631, -inf
        %704 = vmax.xlane.f32.xlu0 %v703
        %v705 = vpop.xlane.xlu0 %704
        %v706 = vsel %vm614, %v654, -inf
        %707 = vmax.xlane.f32.xlu0 %v706
        %v708 = vpop.xlane.xlu0 %707
        %v709 = vsel %vm614, %v677, -inf
        %710 = vmax.xlane.f32.xlu0 %v709
        %v711 = vpop.xlane.xlu0 %710
        %v712 = vsel %vm614, %v700, -inf
        %713 = vmax.xlane.f32.xlu0 %v712
        %v714 = vpop.xlane.xlu0 %713
        %v715 = vsub.f32 %v631, %v705
        %v716 = vsub.f32 %v654, %v708
        %v717 = vsub.f32 %v677, %v711
        %v718 = vsub.f32 %v700, %v714
        %v719 = vmul.f32 %v715, 1.442695
        %v720 = vpow.pop %v719
        %v721 = vmul.f32 %v716, 1.442695
        %v722 = vpow.pop %v721
        %v723 = vmul.f32 %v717, 1.442695
        %v724 = vpow.pop %v723
        %v725 = vmul.f32 %v718, 1.442695
        %v726 = vpow.pop %v725
        %v727 = vsel %vm614, %v720, 0.0
        %728 = vadd.xlane.f32.xlu0 %v727
        %v729 = vpop.xlane.xlu0 %728
        %v730 = vsel %vm614, %v722, 0.0
        %731 = vadd.xlane.f32.xlu0 %v730
        %v732 = vpop.xlane.xlu0 %731
        %v733 = vsel %vm614, %v724, 0.0
        %734 = vadd.xlane.f32.xlu0 %v733
        %v735 = vpop.xlane.xlu0 %734
        %v736 = vsel %vm614, %v726, 0.0
        %737 = vadd.xlane.f32.xlu0 %v736
        %v738 = vpop.xlane.xlu0 %737
        %v739 = vrcp.pop %v729
        %v740 = vmul.f32 %v729, %v739
        %v741 = vsub.f32 1.0, %v740
        %v742 = vmul.f32 %v739, %v741
        %v743 = vadd.f32 %v739, %v742
        %vm744 = vweird.f32 %v729
        %vm745 = vweird.f32 %v739
        %vm746 = vmor %vm744, %vm745
        %v747 = vsel %vm746, %v739, %v743
        %v748 = vand.u32 2147483647, %v729
        %vm749 = vcmp.eq.f32.partialorder %v748, 8.507059e+37
        %v750 = vand.u32 %v729, 2147483648
        %v751 = vor.u32 1.1754944e-38, %v750
        %v752 = vsel %vm749, %v751, %v747
        %v753 = vmul.f32 %v720, %v752
        %v754 = vrcp.pop %v732
        %v755 = vmul.f32 %v732, %v754
        %v756 = vsub.f32 1.0, %v755
        %v757 = vmul.f32 %v754, %v756
        %v758 = vadd.f32 %v754, %v757
        %vm759 = vweird.f32 %v732
        %vm760 = vweird.f32 %v754
        %vm761 = vmor %vm759, %vm760
        %v762 = vsel %vm761, %v754, %v758
        %v763 = vand.u32 2147483647, %v732
        %vm764 = vcmp.eq.f32.partialorder %v763, 8.507059e+37
        %v765 = vand.u32 %v732, 2147483648
        %v766 = vor.u32 1.1754944e-38, %v765
        %v767 = vsel %vm764, %v766, %v762
        %v768 = vmul.f32 %v722, %v767
        %v769 = vrcp.pop %v735
        %v770 = vmul.f32 %v735, %v769
        %v771 = vsub.f32 1.0, %v770
        %v772 = vmul.f32 %v769, %v771
        %v773 = vadd.f32 %v769, %v772
        %vm774 = vweird.f32 %v735
        %vm775 = vweird.f32 %v769
        %vm776 = vmor %vm774, %vm775
        %v777 = vsel %vm776, %v769, %v773
        %v778 = vand.u32 2147483647, %v735
        %vm779 = vcmp.eq.f32.partialorder %v778, 8.507059e+37
        %v780 = vand.u32 %v735, 2147483648
        %v781 = vor.u32 1.1754944e-38, %v780
        %v782 = vsel %vm779, %v781, %v777
        %v783 = vmul.f32 %v724, %v782
        %v784 = vrcp.pop %v738
        %v785 = vmul.f32 %v738, %v784
        %v786 = vsub.f32 1.0, %v785
        %v787 = vmul.f32 %v784, %v786
        %v788 = vadd.f32 %v784, %v787
        %vm789 = vweird.f32 %v738
        %vm790 = vweird.f32 %v784
        %vm791 = vmor %vm789, %vm790
        %v792 = vsel %vm791, %v784, %v788
        %v793 = vand.u32 2147483647, %v738
        %vm794 = vcmp.eq.f32.partialorder %v793, 8.507059e+37
        %v795 = vand.u32 %v738, 2147483648
        %v796 = vor.u32 1.1754944e-38, %v795
        %v797 = vsel %vm794, %v796, %v792
        %v798 = vmul.f32 %v726, %v797
        %v799 = vpack.c.bf16 %v753, %v753
        %v800 = vpack.c.bf16 %v768, %v768
        %v801 = vpack.c.bf16 %v783, %v783
        %v802 = vpack.c.bf16 %v798, %v798
        %803 = vrot.lane.b32.xlu0 %v611, 64
        %v804 = vpop.permute.xlu0 %803
        %v806 = vsel %vm614, %v799, 0
        %vm808 = vcmask 1043456
        %v810 = vsel %vm808, %v804, 0
        %812 = vmatpush.bf16.msra.mxu0 0
        %813 = vmatpush.bf16.msra.mxu0 0
        %814 = vmatpush.bf16.msra.mxu0 0
        %815 = vmatpush.bf16.msra.mxu0 0
        %816 = vmatpush.bf16.msra.mxu0 0
        %817 = vmatpush.bf16.msra.mxu0 0
        %818 = vmatpush.bf16.msra.mxu0 0
        %819 = vmatpush.bf16.msra.mxu0 %v810
        %820 = vmatmul.bf16.gmra.mxu0 %v806
        %v821 = vpop.f32.mrf.mxu0
        %v822 = vadd.f32 0.0, %v821
        %v823 = vpop.f32.mrf.mxu0
        %824 = vdwg.mxu0
        %825 = vrot.lane.b32.xlu0 %v635, 64
        %v826 = vpop.permute.xlu0 %825
        %v828 = vsel %vm614, %v800, 0
        %v831 = vsel %vm808, %v826, 0
        %833 = vmatpush.bf16.msra.mxu0 0
        %834 = vmatpush.bf16.msra.mxu0 0
        %835 = vmatpush.bf16.msra.mxu0 0
        %836 = vmatpush.bf16.msra.mxu0 0
        %837 = vmatpush.bf16.msra.mxu0 0
        %838 = vmatpush.bf16.msra.mxu0 0
        %839 = vmatpush.bf16.msra.mxu0 0
        %840 = vmatpush.bf16.msra.mxu0 %v831
        %841 = vmatmul.bf16.gmra.mxu0 %v828
        %v842 = vpop.f32.mrf.mxu0
        %v843 = vadd.f32 0.0, %v842
        %v844 = vpop.f32.mrf.mxu0
        %845 = vdwg.mxu0
        %846 = vrot.lane.b32.xlu0 %v658, 64
        %v847 = vpop.permute.xlu0 %846
        %v849 = vsel %vm614, %v801, 0
        %v852 = vsel %vm808, %v847, 0
        %854 = vmatpush.bf16.msra.mxu0 0
        %855 = vmatpush.bf16.msra.mxu0 0
        %856 = vmatpush.bf16.msra.mxu0 0
        %857 = vmatpush.bf16.msra.mxu0 0
        %858 = vmatpush.bf16.msra.mxu0 0
        %859 = vmatpush.bf16.msra.mxu0 0
        %860 = vmatpush.bf16.msra.mxu0 0
        %861 = vmatpush.bf16.msra.mxu0 %v852
        %862 = vmatmul.bf16.gmra.mxu0 %v849
        %v863 = vpop.f32.mrf.mxu0
        %v864 = vadd.f32 0.0, %v863
        %v865 = vpop.f32.mrf.mxu0
        %866 = vdwg.mxu0
        %867 = vrot.lane.b32.xlu0 %v681, 64
        %v868 = vpop.permute.xlu0 %867
        %v870 = vsel %vm614, %v802, 0
        %v873 = vsel %vm808, %v868, 0
        %875 = vmatpush.bf16.msra.mxu0 0
        %876 = vmatpush.bf16.msra.mxu0 0
        %877 = vmatpush.bf16.msra.mxu0 0
        %878 = vmatpush.bf16.msra.mxu0 0
        %879 = vmatpush.bf16.msra.mxu0 0
        %880 = vmatpush.bf16.msra.mxu0 0
        %881 = vmatpush.bf16.msra.mxu0 0
        %882 = vmatpush.bf16.msra.mxu0 %v873
        %883 = vmatmul.bf16.gmra.mxu0 %v870
        %v884 = vpop.f32.mrf.mxu0
        %v885 = vadd.f32 0.0, %v884
        %v886 = vpop.f32.mrf.mxu0
        %887 = vdwg.mxu0
        %v888 = vpack.c.bf16 %v822, %v822
        %v889 = vpack.c.bf16 %v843, %v843
        %v890 = vpack.c.bf16 %v864, %v864
        %v891 = vpack.c.bf16 %v885, %v885
        %v892 = vld [vmem:[%s3] sm:$0xf]
        %v893 = vld [vmem:[%s3 + $0x4] sm:$0xf]
        %v894 = vld [vmem:[%s3 + $0x8] sm:$0xf]
        %v895 = vld [vmem:[%s3 + $0xc] sm:$0xf]
        %v897 = vsel %vm614, %v888, 0
        %v900 = vsel %vm808, %v892, 0
        %902 = vmatpush.bf16.msra.mxu0 0
        %903 = vmatpush.bf16.msra.mxu0 0
        %904 = vmatpush.bf16.msra.mxu0 0
        %905 = vmatpush.bf16.msra.mxu0 0
        %906 = vmatpush.bf16.msra.mxu0 0
        %907 = vmatpush.bf16.msra.mxu0 0
        %908 = vmatpush.bf16.msra.mxu0 0
        %909 = vmatpush.bf16.msra.mxu0 %v900
        %910 = vmatmul.bf16.gmra.mxu0 %v897
        %v911 = vpop.f32.mrf.mxu0
        %v912 = vadd.f32 0.0, %v911
        %v913 = vpop.f32.mrf.mxu0
        %914 = vdwg.mxu0
        %v916 = vsel %vm614, %v889, 0
        %v919 = vsel %vm808, %v893, 0
        %921 = vmatpush.bf16.msra.mxu0 0
        %922 = vmatpush.bf16.msra.mxu0 0
        %923 = vmatpush.bf16.msra.mxu0 0
        %924 = vmatpush.bf16.msra.mxu0 0
        %925 = vmatpush.bf16.msra.mxu0 0
        %926 = vmatpush.bf16.msra.mxu0 0
        %927 = vmatpush.bf16.msra.mxu0 0
        %928 = vmatpush.bf16.msra.mxu0 %v919
        %929 = vmatmul.bf16.gmra.mxu0 %v916
        %v930 = vpop.f32.mrf.mxu0
        %v931 = vadd.f32 0.0, %v930
        %v932 = vpop.f32.mrf.mxu0
        %933 = vdwg.mxu0
        %v935 = vsel %vm614, %v890, 0
        %v938 = vsel %vm808, %v894, 0
        %940 = vmatpush.bf16.msra.mxu0 0
        %941 = vmatpush.bf16.msra.mxu0 0
        %942 = vmatpush.bf16.msra.mxu0 0
        %943 = vmatpush.bf16.msra.mxu0 0
        %944 = vmatpush.bf16.msra.mxu0 0
        %945 = vmatpush.bf16.msra.mxu0 0
        %946 = vmatpush.bf16.msra.mxu0 0
        %947 = vmatpush.bf16.msra.mxu0 %v938
        %948 = vmatmul.bf16.gmra.mxu0 %v935
        %v949 = vpop.f32.mrf.mxu0
        %v950 = vadd.f32 0.0, %v949
        %v951 = vpop.f32.mrf.mxu0
        %952 = vdwg.mxu0
        %v954 = vsel %vm614, %v891, 0
        %v957 = vsel %vm808, %v895, 0
        %959 = vmatpush.bf16.msra.mxu0 0
        %960 = vmatpush.bf16.msra.mxu0 0
        %961 = vmatpush.bf16.msra.mxu0 0
        %962 = vmatpush.bf16.msra.mxu0 0
        %963 = vmatpush.bf16.msra.mxu0 0
        %964 = vmatpush.bf16.msra.mxu0 0
        %965 = vmatpush.bf16.msra.mxu0 0
        %966 = vmatpush.bf16.msra.mxu0 %v957
        %967 = vmatmul.bf16.gmra.mxu0 %v954
        %v968 = vpop.f32.mrf.mxu0
        %v969 = vadd.f32 0.0, %v968
        %v970 = vpop.f32.mrf.mxu0
        %971 = vdwg.mxu0
        %v972 = vsel %vm585, %v912, 0.0
        %v973 = vsel %vm585, %v931, 0.0
        %v974 = vadd.f32 %v972, %v973
        %v975 = vsel %vm585, %v950, 0.0
        %v976 = vadd.f32 %v974, %v975
        %v977 = vsel %vm585, %v969, 0.0
        %v978 = vadd.f32 %v976, %v977
        %v979 = vld [vmem:[%s4] sm:$0x1]
        %v981 = vperm.slane %v979, 0
        %v983 = vadd.f32 %v978, %v981
        %v984 = vadd.f32 %v563, %v983
        %v985 = vld [vmem:[#allocation7] sm:$0x1]
        %v986 = vld [vmem:[%s10] sm:$0x1]
        %v987 = vsel %vm585, %v984, 0.0
        %988 = vadd.xlane.f32.xlu0 %v987
        %v989 = vpop.xlane.xlu0 %988
        %v990 = vrcp.pop 32.0
        %v991 = vmul.f32 32.0, %v990
        %v992 = vsub.f32 1.0, %v991
        %v993 = vmul.f32 %v990, %v992
        %v994 = vadd.f32 %v990, %v993
        %vm995 = vweird.f32 %v990
        %v996 = vsel %vm995, %v990, %v994
        %v997 = vmul.f32 %v989, %v996
        %v998 = vsub.f32 %v984, %v997
        %v999 = vmul.f32 %v998, %v998
        %v1000 = vsel %vm585, %v999, 0.0
        %1001 = vadd.xlane.f32.xlu0 %v1000
        %v1002 = vpop.xlane.xlu0 %1001
        %v1003 = vmul.f32 %v1002, %v996
        %v1004 = vadd.f32 %v1003, 1e-05
        %v1005 = vrsqrt.pop %v1004
        %v1006 = vmul.f32 %v1005, %v1004
        %v1007 = vmul.f32 %v1006, %v1005
        %v1008 = vmul.f32 0.5, %v1007
        %v1009 = vsub.f32 1.5, %v1008
        %v1010 = vmul.f32 %v1005, %v1009
        %vm1011 = vweird.f32 %v1004
        %vm1012 = vweird.f32 %v1005
        %vm1013 = vmor %vm1011, %vm1012
        %v1014 = vsel %vm1013, %v1005, %v1010
        %v1015 = vmul.f32 %v998, %v1014
        %v1017 = vperm.slane %v985, 0
        %v1019 = vmul.f32 %v1015, %v1017
        %v1021 = vperm.slane %v986, 0
        %v1023 = vadd.f32 %v1019, %v1021
        %v1024 = vpack.c.bf16 %v1023, %v1023
        %v1025 = vld [vmem:[%s5] sm:$0xf]
        %v1026 = vld [vmem:[%s5 + $0x4] sm:$0xf]
        %v1027 = vld [vmem:[%s5 + $0x8] sm:$0xf]
        %v1028 = vld [vmem:[%s5 + $0xc] sm:$0xf]
        %v1029 = vld [vmem:[%s6] sm:$0x1]
        %v1031 = vperm.slane %v1029, 0
        %v1037 = vunpack.c.l.b16 %v1025
        %v1038 = vunpack.c.l.b16 %v1026
        %v1039 = vunpack.c.l.b16 %v1027
        %v1040 = vunpack.c.l.b16 %v1028
        %v1041 = vpack.c.b16 %v1038, %v1037
        %v1042 = vpack.c.b16 %v1040, %v1039
        %v1046 = vsel %vm585, %v1024, 0
        %1048 = vmatpush.bf16.msra.mxu0 0
        %1049 = vmatpush.bf16.msra.mxu0 0
        %1050 = vmatpush.bf16.msra.mxu0 0
        %1051 = vmatpush.bf16.msra.mxu0 0
        %1052 = vmatpush.bf16.msra.mxu0 0
        %1053 = vmatpush.bf16.msra.mxu0 0
        %1054 = vmatpush.bf16.msra.mxu0 %v1042
        %1055 = vmatpush.bf16.msra.mxu0 %v1041
        %1056 = vmatmul.bf16.gmra.mxu0 %v1046
        %v1057 = vpop.f32.mrf.mxu0
        %v1058 = vadd.f32 %v1031, %v1057
        %v1059 = vpop.f32.mrf.mxu0
        %1060 = vdwg.mxu0
        %v1061 = vmax.f32 %v1058, 0.0
        %v1062 = vpack.c.bf16 %v1061, %v1061
        %v1063 = vld [vmem:[%s7] sm:$0xf]
        %v1064 = vld [vmem:[%s7 + $0x4] sm:$0xf]
        %v1065 = vld [vmem:[%s7 + $0x8] sm:$0xf]
        %v1066 = vld [vmem:[%s7 + $0xc] sm:$0xf]
        %v1067 = vld [vmem:[%s7 + $0x10] sm:$0xf]
        %v1068 = vld [vmem:[%s7 + $0x14] sm:$0xf]
        %v1069 = vld [vmem:[%s7 + $0x18] sm:$0xf]
        %v1070 = vld [vmem:[%s7 + $0x1c] sm:$0xf]
        %v1071 = vld [vmem:[%s8] sm:$0x1]
        %v1073 = vperm.slane %v1071, 0
        %v1083 = vunpack.c.l.b16 %v1063
        %v1084 = vunpack.c.l.b16 %v1064
        %v1085 = vunpack.c.l.b16 %v1065
        %v1086 = vunpack.c.l.b16 %v1066
        %v1087 = vunpack.c.l.b16 %v1067
        %v1088 = vunpack.c.l.b16 %v1068
        %v1089 = vunpack.c.l.b16 %v1069
        %v1090 = vunpack.c.l.b16 %v1070
        %v1091 = vpack.c.b16 %v1084, %v1083
        %v1092 = vpack.c.b16 %v1086, %v1085
        %v1093 = vpack.c.b16 %v1088, %v1087
        %v1094 = vpack.c.b16 %v1090, %v1089
        %vm1099 = vcmask 523264
        %v1101 = vsel %vm1099, %v1062, 0
        %1103 = vmatpush.bf16.msra.mxu0 0
        %1104 = vmatpush.bf16.msra.mxu0 0
        %1105 = vmatpush.bf16.msra.mxu0 0
        %1106 = vmatpush.bf16.msra.mxu0 0
        %1107 = vmatpush.bf16.msra.mxu0 %v1094
        %1108 = vmatpush.bf16.msra.mxu0 %v1093
        %1109 = vmatpush.bf16.msra.mxu0 %v1092
        %1110 = vmatpush.bf16.msra.mxu0 %v1091
        %1111 = vmatmul.bf16.gmra.mxu0 %v1101
        %v1112 = vpop.f32.mrf.mxu0
        %v1113 = vadd.f32 %v1073, %v1112
        %v1114 = vpop.f32.mrf.mxu0
        %1115 = vdwg.mxu0
        %v1116 = vadd.f32 %v1023, %v1113
        %v1117 = vld [vmem:[#allocation8] sm:$0x1]
        %v1118 = vld [vmem:[%s12] sm:$0x1]
        %v1119 = vsel %vm585, %v1116, 0.0
        %1120 = vadd.xlane.f32.xlu0 %v1119
        %v1121 = vpop.xlane.xlu0 %1120
        %v1122 = vmul.f32 %v1121, %v996
        %v1123 = vsub.f32 %v1116, %v1122
        %v1124 = vmul.f32 %v1123, %v1123
        %v1125 = vsel %vm585, %v1124, 0.0
        %1126 = vadd.xlane.f32.xlu0 %v1125
        %v1127 = vpop.xlane.xlu0 %1126
        %v1128 = vmul.f32 %v1127, %v996
        %v1129 = vadd.f32 %v1128, 1e-05
        %v1130 = vrsqrt.pop %v1129
        %v1131 = vmul.f32 %v1130, %v1129
        %v1132 = vmul.f32 %v1131, %v1130
        %v1133 = vmul.f32 0.5, %v1132
        %v1134 = vsub.f32 1.5, %v1133
        %v1135 = vmul.f32 %v1130, %v1134
        %vm1136 = vweird.f32 %v1129
        %vm1137 = vweird.f32 %v1130
        %vm1138 = vmor %vm1136, %vm1137
        %v1139 = vsel %vm1138, %v1130, %v1135
        %v1140 = vmul.f32 %v1123, %v1139
        %v1142 = vperm.slane %v1117, 0
        %v1144 = vmul.f32 %v1140, %v1142
        %v1146 = vperm.slane %v1118, 0
        %v1148 = vadd.f32 %v1144, %v1146
        %v1149 = vpack.c.bf16 %v1148, %v1148
        %s1150 = scalar_lea.vmem %s1, 16
        %v1151 = vld [vmem:[%s1150] sm:$0xf]
        %v1152 = vld [vmem:[%s1150 + $0x4] sm:$0xf]
        %v1153 = vld [vmem:[%s1150 + $0x8] sm:$0xf]
        %v1154 = vld [vmem:[%s1150 + $0xc] sm:$0xf]
        %s1155 = scalar_lea.vmem [#allocation5], 1
        %v1156 = vld [vmem:[%s1155] sm:$0x1]
        %v1158 = vperm.slane %v1156, 0
        %v1164 = vunpack.c.l.b16 %v1151
        %v1165 = vunpack.c.l.b16 %v1152
        %v1166 = vunpack.c.l.b16 %v1153
        %v1167 = vunpack.c.l.b16 %v1154
        %v1168 = vpack.c.b16 %v1165, %v1164
        %v1169 = vpack.c.b16 %v1167, %v1166
        %v1173 = vsel %vm585, %v1149, 0
        %1175 = vmatpush.bf16.msra.mxu0 0
        %1176 = vmatpush.bf16.msra.mxu0 0
        %1177 = vmatpush.bf16.msra.mxu0 0
        %1178 = vmatpush.bf16.msra.mxu0 0
        %1179 = vmatpush.bf16.msra.mxu0 0
        %1180 = vmatpush.bf16.msra.mxu0 0
        %1181 = vmatpush.bf16.msra.mxu0 %v1169
        %1182 = vmatpush.bf16.msra.mxu0 %v1168
        %1183 = vmatmul.bf16.gmra.mxu0 %v1173
        %v1184 = vpop.f32.mrf.mxu0
        %v1185 = vadd.f32 %v1158, %v1184
        %v1186 = vpop.f32.mrf.mxu0
        %1187 = vdwg.mxu0
        %v1188 = vpack.c.bf16 %v1185, %v1185
        %1190 = vrot.lane.b32.xlu0 %v1188, 120
        %v1191 = vpop.permute.xlu0 %1190
        %1192 = vrot.lane.b32.xlu0 %v1188, 112
        %v1193 = vpop.permute.xlu0 %1192
        %1194 = vrot.lane.b32.xlu0 %v1188, 104
        %v1195 = vpop.permute.xlu0 %1194
        %v1196 = vunpack.c.l.b16 %v1188
        %v1197 = vpack.c.b16 %v1196, %v1196
        %1198 = vrot.lane.b32.xlu0 %v1197, 96
        %v1199 = vpop.permute.xlu0 %1198
        %v1201 = vsel %vm614, %v1188, 0
        %v1204 = vsel %vm614, %v1199, 0
        %1206 = vmatpush.bf16.xpose.msra.mxu0 0
        %1207 = vmatpush.bf16.xpose.msra.mxu0 0
        %1208 = vmatpush.bf16.xpose.msra.mxu0 0
        %1209 = vmatpush.bf16.xpose.msra.mxu0 0
        %1210 = vmatpush.bf16.xpose.msra.mxu0 0
        %1211 = vmatpush.bf16.xpose.msra.mxu0 0
        %1212 = vmatpush.bf16.xpose.msra.mxu0 0
        %1213 = vmatpush.bf16.xpose.msra.mxu0 %v1204
        %1214 = vmatmul.bf16.gmra.mxu0 %v1201
        %v1215 = vpop.f32.mrf.mxu0
        %v1216 = vadd.f32 0.0, %v1215
        %v1217 = vpop.f32.mrf.mxu0
        %1218 = vdwg.mxu0
        %v1219 = vunpack.c.l.b16 %v1191
        %v1220 = vpack.c.b16 %v1219, %v1219
        %1221 = vrot.lane.b32.xlu0 %v1220, 96
        %v1222 = vpop.permute.xlu0 %1221
        %v1224 = vsel %vm614, %v1191, 0
        %v1227 = vsel %vm614, %v1222, 0
        %1229 = vmatpush.bf16.xpose.msra.mxu0 0
        %1230 = vmatpush.bf16.xpose.msra.mxu0 0
        %1231 = vmatpush.bf16.xpose.msra.mxu0 0
        %1232 = vmatpush.bf16.xpose.msra.mxu0 0
        %1233 = vmatpush.bf16.xpose.msra.mxu0 0
        %1234 = vmatpush.bf16.xpose.msra.mxu0 0
        %1235 = vmatpush.bf16.xpose.msra.mxu0 0
        %1236 = vmatpush.bf16.xpose.msra.mxu0 %v1227
        %1237 = vmatmul.bf16.gmra.mxu0 %v1224
        %v1238 = vpop.f32.mrf.mxu0
        %v1239 = vadd.f32 0.0, %v1238
        %v1240 = vpop.f32.mrf.mxu0
        %1241 = vdwg.mxu0
        %v1242 = vunpack.c.l.b16 %v1193
        %v1243 = vpack.c.b16 %v1242, %v1242
        %1244 = vrot.lane.b32.xlu0 %v1243, 96
        %v1245 = vpop.permute.xlu0 %1244
        %v1247 = vsel %vm614, %v1193, 0
        %v1250 = vsel %vm614, %v1245, 0
        %1252 = vmatpush.bf16.xpose.msra.mxu0 0
        %1253 = vmatpush.bf16.xpose.msra.mxu0 0
        %1254 = vmatpush.bf16.xpose.msra.mxu0 0
        %1255 = vmatpush.bf16.xpose.msra.mxu0 0
        %1256 = vmatpush.bf16.xpose.msra.mxu0 0
        %1257 = vmatpush.bf16.xpose.msra.mxu0 0
        %1258 = vmatpush.bf16.xpose.msra.mxu0 0
        %1259 = vmatpush.bf16.xpose.msra.mxu0 %v1250
        %1260 = vmatmul.bf16.gmra.mxu0 %v1247
        %v1261 = vpop.f32.mrf.mxu0
        %v1262 = vadd.f32 0.0, %v1261
        %v1263 = vpop.f32.mrf.mxu0
        %1264 = vdwg.mxu0
        %v1265 = vunpack.c.l.b16 %v1195
        %v1266 = vpack.c.b16 %v1265, %v1265
        %1267 = vrot.lane.b32.xlu0 %v1266, 96
        %v1268 = vpop.permute.xlu0 %1267
        %v1270 = vsel %vm614, %v1195, 0
        %v1273 = vsel %vm614, %v1268, 0
        %1275 = vmatpush.bf16.xpose.msra.mxu0 0
        %1276 = vmatpush.bf16.xpose.msra.mxu0 0
        %1277 = vmatpush.bf16.xpose.msra.mxu0 0
        %1278 = vmatpush.bf16.xpose.msra.mxu0 0
        %1279 = vmatpush.bf16.xpose.msra.mxu0 0
        %1280 = vmatpush.bf16.xpose.msra.mxu0 0
        %1281 = vmatpush.bf16.xpose.msra.mxu0 0
        %1282 = vmatpush.bf16.xpose.msra.mxu0 %v1273
        %1283 = vmatmul.bf16.gmra.mxu0 %v1270
        %v1284 = vpop.f32.mrf.mxu0
        %v1285 = vadd.f32 0.0, %v1284
        %v1286 = vpop.f32.mrf.mxu0
        %1287 = vdwg.mxu0
        %v1288 = vsel %vm614, %v1216, -inf
        %1289 = vmax.xlane.f32.xlu0 %v1288
        %v1290 = vpop.xlane.xlu0 %1289
        %v1291 = vsel %vm614, %v1239, -inf
        %1292 = vmax.xlane.f32.xlu0 %v1291
        %v1293 = vpop.xlane.xlu0 %1292
        %v1294 = vsel %vm614, %v1262, -inf
        %1295 = vmax.xlane.f32.xlu0 %v1294
        %v1296 = vpop.xlane.xlu0 %1295
        %v1297 = vsel %vm614, %v1285, -inf
        %1298 = vmax.xlane.f32.xlu0 %v1297
        %v1299 = vpop.xlane.xlu0 %1298
        %v1300 = vsub.f32 %v1216, %v1290
        %v1301 = vsub.f32 %v1239, %v1293
        %v1302 = vsub.f32 %v1262, %v1296
        %v1303 = vsub.f32 %v1285, %v1299
        %v1304 = vmul.f32 %v1300, 1.442695
        %v1305 = vpow.pop %v1304
        %v1306 = vmul.f32 %v1301, 1.442695
        %v1307 = vpow.pop %v1306
        %v1308 = vmul.f32 %v1302, 1.442695
        %v1309 = vpow.pop %v1308
        %v1310 = vmul.f32 %v1303, 1.442695
        %v1311 = vpow.pop %v1310
        %v1312 = vsel %vm614, %v1305, 0.0
        %1313 = vadd.xlane.f32.xlu0 %v1312
        %v1314 = vpop.xlane.xlu0 %1313
        %v1315 = vsel %vm614, %v1307, 0.0
        %1316 = vadd.xlane.f32.xlu0 %v1315
        %v1317 = vpop.xlane.xlu0 %1316
        %v1318 = vsel %vm614, %v1309, 0.0
        %1319 = vadd.xlane.f32.xlu0 %v1318
        %v1320 = vpop.xlane.xlu0 %1319
        %v1321 = vsel %vm614, %v1311, 0.0
        %1322 = vadd.xlane.f32.xlu0 %v1321
        %v1323 = vpop.xlane.xlu0 %1322
        %v1324 = vrcp.pop %v1314
        %v1325 = vmul.f32 %v1314, %v1324
        %v1326 = vsub.f32 1.0, %v1325
        %v1327 = vmul.f32 %v1324, %v1326
        %v1328 = vadd.f32 %v1324, %v1327
        %vm1329 = vweird.f32 %v1314
        %vm1330 = vweird.f32 %v1324
        %vm1331 = vmor %vm1329, %vm1330
        %v1332 = vsel %vm1331, %v1324, %v1328
        %v1333 = vand.u32 2147483647, %v1314
        %vm1334 = vcmp.eq.f32.partialorder %v1333, 8.507059e+37
        %v1335 = vand.u32 %v1314, 2147483648
        %v1336 = vor.u32 1.1754944e-38, %v1335
        %v1337 = vsel %vm1334, %v1336, %v1332
        %v1338 = vmul.f32 %v1305, %v1337
        %v1339 = vrcp.pop %v1317
        %v1340 = vmul.f32 %v1317, %v1339
        %v1341 = vsub.f32 1.0, %v1340
        %v1342 = vmul.f32 %v1339, %v1341
        %v1343 = vadd.f32 %v1339, %v1342
        %vm1344 = vweird.f32 %v1317
        %vm1345 = vweird.f32 %v1339
        %vm1346 = vmor %vm1344, %vm1345
        %v1347 = vsel %vm1346, %v1339, %v1343
        %v1348 = vand.u32 2147483647, %v1317
        %vm1349 = vcmp.eq.f32.partialorder %v1348, 8.507059e+37
        %v1350 = vand.u32 %v1317, 2147483648
        %v1351 = vor.u32 1.1754944e-38, %v1350
        %v1352 = vsel %vm1349, %v1351, %v1347
        %v1353 = vmul.f32 %v1307, %v1352
        %v1354 = vrcp.pop %v1320
        %v1355 = vmul.f32 %v1320, %v1354
        %v1356 = vsub.f32 1.0, %v1355
        %v1357 = vmul.f32 %v1354, %v1356
        %v1358 = vadd.f32 %v1354, %v1357
        %vm1359 = vweird.f32 %v1320
        %vm1360 = vweird.f32 %v1354
        %vm1361 = vmor %vm1359, %vm1360
        %v1362 = vsel %vm1361, %v1354, %v1358
        %v1363 = vand.u32 2147483647, %v1320
        %vm1364 = vcmp.eq.f32.partialorder %v1363, 8.507059e+37
        %v1365 = vand.u32 %v1320, 2147483648
        %v1366 = vor.u32 1.1754944e-38, %v1365
        %v1367 = vsel %vm1364, %v1366, %v1362
        %v1368 = vmul.f32 %v1309, %v1367
        %v1369 = vrcp.pop %v1323
        %v1370 = vmul.f32 %v1323, %v1369
        %v1371 = vsub.f32 1.0, %v1370
        %v1372 = vmul.f32 %v1369, %v1371
        %v1373 = vadd.f32 %v1369, %v1372
        %vm1374 = vweird.f32 %v1323
        %vm1375 = vweird.f32 %v1369
        %vm1376 = vmor %vm1374, %vm1375
        %v1377 = vsel %vm1376, %v1369, %v1373
        %v1378 = vand.u32 2147483647, %v1323
        %vm1379 = vcmp.eq.f32.partialorder %v1378, 8.507059e+37
        %v1380 = vand.u32 %v1323, 2147483648
        %v1381 = vor.u32 1.1754944e-38, %v1380
        %v1382 = vsel %vm1379, %v1381, %v1377
        %v1383 = vmul.f32 %v1311, %v1382
        %v1384 = vpack.c.bf16 %v1338, %v1338
        %v1385 = vpack.c.bf16 %v1353, %v1353
        %v1386 = vpack.c.bf16 %v1368, %v1368
        %v1387 = vpack.c.bf16 %v1383, %v1383
        %1388 = vrot.lane.b32.xlu0 %v1197, 64
        %v1389 = vpop.permute.xlu0 %1388
        %v1391 = vsel %vm614, %v1384, 0
        %v1394 = vsel %vm808, %v1389, 0
        %1396 = vmatpush.bf16.msra.mxu0 0
        %1397 = vmatpush.bf16.msra.mxu0 0
        %1398 = vmatpush.bf16.msra.mxu0 0
        %1399 = vmatpush.bf16.msra.mxu0 0
        %1400 = vmatpush.bf16.msra.mxu0 0
        %1401 = vmatpush.bf16.msra.mxu0 0
        %1402 = vmatpush.bf16.msra.mxu0 0
        %1403 = vmatpush.bf16.msra.mxu0 %v1394
        %1404 = vmatmul.bf16.gmra.mxu0 %v1391
        %v1405 = vpop.f32.mrf.mxu0
        %v1406 = vadd.f32 0.0, %v1405
        %v1407 = vpop.f32.mrf.mxu0
        %1408 = vdwg.mxu0
        %1409 = vrot.lane.b32.xlu0 %v1220, 64
        %v1410 = vpop.permute.xlu0 %1409
        %v1412 = vsel %vm614, %v1385, 0
        %v1415 = vsel %vm808, %v1410, 0
        %1417 = vmatpush.bf16.msra.mxu0 0
        %1418 = vmatpush.bf16.msra.mxu0 0
        %1419 = vmatpush.bf16.msra.mxu0 0
        %1420 = vmatpush.bf16.msra.mxu0 0
        %1421 = vmatpush.bf16.msra.mxu0 0
        %1422 = vmatpush.bf16.msra.mxu0 0
        %1423 = vmatpush.bf16.msra.mxu0 0
        %1424 = vmatpush.bf16.msra.mxu0 %v1415
        %1425 = vmatmul.bf16.gmra.mxu0 %v1412
        %v1426 = vpop.f32.mrf.mxu0
        %v1427 = vadd.f32 0.0, %v1426
        %v1428 = vpop.f32.mrf.mxu0
        %1429 = vdwg.mxu0
        %1430 = vrot.lane.b32.xlu0 %v1243, 64
        %v1431 = vpop.permute.xlu0 %1430
        %v1433 = vsel %vm614, %v1386, 0
        %v1436 = vsel %vm808, %v1431, 0
        %1438 = vmatpush.bf16.msra.mxu0 0
        %1439 = vmatpush.bf16.msra.mxu0 0
        %1440 = vmatpush.bf16.msra.mxu0 0
        %1441 = vmatpush.bf16.msra.mxu0 0
        %1442 = vmatpush.bf16.msra.mxu0 0
        %1443 = vmatpush.bf16.msra.mxu0 0
        %1444 = vmatpush.bf16.msra.mxu0 0
        %1445 = vmatpush.bf16.msra.mxu0 %v1436
        %1446 = vmatmul.bf16.gmra.mxu0 %v1433
        %v1447 = vpop.f32.mrf.mxu0
        %v1448 = vadd.f32 0.0, %v1447
        %v1449 = vpop.f32.mrf.mxu0
        %1450 = vdwg.mxu0
        %1451 = vrot.lane.b32.xlu0 %v1266, 64
        %v1452 = vpop.permute.xlu0 %1451
        %v1454 = vsel %vm614, %v1387, 0
        %v1457 = vsel %vm808, %v1452, 0
        %1459 = vmatpush.bf16.msra.mxu0 0
        %1460 = vmatpush.bf16.msra.mxu0 0
        %1461 = vmatpush.bf16.msra.mxu0 0
        %1462 = vmatpush.bf16.msra.mxu0 0
        %1463 = vmatpush.bf16.msra.mxu0 0
        %1464 = vmatpush.bf16.msra.mxu0 0
        %1465 = vmatpush.bf16.msra.mxu0 0
        %1466 = vmatpush.bf16.msra.mxu0 %v1457
        %1467 = vmatmul.bf16.gmra.mxu0 %v1454
        %v1468 = vpop.f32.mrf.mxu0
        %v1469 = vadd.f32 0.0, %v1468
        %v1470 = vpop.f32.mrf.mxu0
        %1471 = vdwg.mxu0
        %v1472 = vpack.c.bf16 %v1406, %v1406
        %v1473 = vpack.c.bf16 %v1427, %v1427
        %v1474 = vpack.c.bf16 %v1448, %v1448
        %v1475 = vpack.c.bf16 %v1469, %v1469
        %s1476 = scalar_lea.vmem %s3, 16
        %v1477 = vld [vmem:[%s1476] sm:$0xf]
        %v1478 = vld [vmem:[%s1476 + $0x4] sm:$0xf]
        %v1479 = vld [vmem:[%s1476 + $0x8] sm:$0xf]
        %v1480 = vld [vmem:[%s1476 + $0xc] sm:$0xf]
        %v1482 = vsel %vm614, %v1472, 0
        %v1485 = vsel %vm808, %v1477, 0
        %1487 = vmatpush.bf16.msra.mxu0 0
        %1488 = vmatpush.bf16.msra.mxu0 0
        %1489 = vmatpush.bf16.msra.mxu0 0
        %1490 = vmatpush.bf16.msra.mxu0 0
        %1491 = vmatpush.bf16.msra.mxu0 0
        %1492 = vmatpush.bf16.msra.mxu0 0
        %1493 = vmatpush.bf16.msra.mxu0 0
        %1494 = vmatpush.bf16.msra.mxu0 %v1485
        %1495 = vmatmul.bf16.gmra.mxu0 %v1482
        %v1496 = vpop.f32.mrf.mxu0
        %v1497 = vadd.f32 0.0, %v1496
        %v1498 = vpop.f32.mrf.mxu0
        %1499 = vdwg.mxu0
        %v1501 = vsel %vm614, %v1473, 0
        %v1504 = vsel %vm808, %v1478, 0
        %1506 = vmatpush.bf16.msra.mxu0 0
        %1507 = vmatpush.bf16.msra.mxu0 0
        %1508 = vmatpush.bf16.msra.mxu0 0
        %1509 = vmatpush.bf16.msra.mxu0 0
        %1510 = vmatpush.bf16.msra.mxu0 0
        %1511 = vmatpush.bf16.msra.mxu0 0
        %1512 = vmatpush.bf16.msra.mxu0 0
        %1513 = vmatpush.bf16.msra.mxu0 %v1504
        %1514 = vmatmul.bf16.gmra.mxu0 %v1501
        %v1515 = vpop.f32.mrf.mxu0
        %v1516 = vadd.f32 0.0, %v1515
        %v1517 = vpop.f32.mrf.mxu0
        %1518 = vdwg.mxu0
        %v1520 = vsel %vm614, %v1474, 0
        %v1523 = vsel %vm808, %v1479, 0
        %1525 = vmatpush.bf16.msra.mxu0 0
        %1526 = vmatpush.bf16.msra.mxu0 0
        %1527 = vmatpush.bf16.msra.mxu0 0
        %1528 = vmatpush.bf16.msra.mxu0 0
        %1529 = vmatpush.bf16.msra.mxu0 0
        %1530 = vmatpush.bf16.msra.mxu0 0
        %1531 = vmatpush.bf16.msra.mxu0 0
        %1532 = vmatpush.bf16.msra.mxu0 %v1523
        %1533 = vmatmul.bf16.gmra.mxu0 %v1520
        %v1534 = vpop.f32.mrf.mxu0
        %v1535 = vadd.f32 0.0, %v1534
        %v1536 = vpop.f32.mrf.mxu0
        %1537 = vdwg.mxu0
        %v1539 = vsel %vm614, %v1475, 0
        %v1542 = vsel %vm808, %v1480, 0
        %1544 = vmatpush.bf16.msra.mxu0 0
        %1545 = vmatpush.bf16.msra.mxu0 0
        %1546 = vmatpush.bf16.msra.mxu0 0
        %1547 = vmatpush.bf16.msra.mxu0 0
        %1548 = vmatpush.bf16.msra.mxu0 0
        %1549 = vmatpush.bf16.msra.mxu0 0
        %1550 = vmatpush.bf16.msra.mxu0 0
        %1551 = vmatpush.bf16.msra.mxu0 %v1542
        %1552 = vmatmul.bf16.gmra.mxu0 %v1539
        %v1553 = vpop.f32.mrf.mxu0
        %v1554 = vadd.f32 0.0, %v1553
        %v1555 = vpop.f32.mrf.mxu0
        %1556 = vdwg.mxu0
        %v1557 = vsel %vm585, %v1497, 0.0
        %v1558 = vsel %vm585, %v1516, 0.0
        %v1559 = vadd.f32 %v1557, %v1558
        %v1560 = vsel %vm585, %v1535, 0.0
        %v1561 = vadd.f32 %v1559, %v1560
        %v1562 = vsel %vm585, %v1554, 0.0
        %v1563 = vadd.f32 %v1561, %v1562
        %s1564 = scalar_lea.vmem %s4, 1
        %v1565 = vld [vmem:[%s1564] sm:$0x1]
        %v1567 = vperm.slane %v1565, 0
        %v1569 = vadd.f32 %v1563, %v1567
        %v1570 = vadd.f32 %v1148, %v1569
        %s1571 = scalar_lea.vmem [#allocation7], 1
        %v1572 = vld [vmem:[%s1571] sm:$0x1]
        %s1573 = scalar_lea.vmem %s10, 1
        %v1574 = vld [vmem:[%s1573] sm:$0x1]
        %v1575 = vsel %vm585, %v1570, 0.0
        %1576 = vadd.xlane.f32.xlu0 %v1575
        %v1577 = vpop.xlane.xlu0 %1576
        %v1578 = vmul.f32 %v1577, %v996
        %v1579 = vsub.f32 %v1570, %v1578
        %v1580 = vmul.f32 %v1579, %v1579
        %v1581 = vsel %vm585, %v1580, 0.0
        %1582 = vadd.xlane.f32.xlu0 %v1581
        %v1583 = vpop.xlane.xlu0 %1582
        %v1584 = vmul.f32 %v1583, %v996
        %v1585 = vadd.f32 %v1584, 1e-05
        %v1586 = vrsqrt.pop %v1585
        %v1587 = vmul.f32 %v1586, %v1585
        %v1588 = vmul.f32 %v1587, %v1586
        %v1589 = vmul.f32 0.5, %v1588
        %v1590 = vsub.f32 1.5, %v1589
        %v1591 = vmul.f32 %v1586, %v1590
        %vm1592 = vweird.f32 %v1585
        %vm1593 = vweird.f32 %v1586
        %vm1594 = vmor %vm1592, %vm1593
        %v1595 = vsel %vm1594, %v1586, %v1591
        %v1596 = vmul.f32 %v1579, %v1595
        %v1598 = vperm.slane %v1572, 0
        %v1600 = vmul.f32 %v1596, %v1598
        %v1602 = vperm.slane %v1574, 0
        %v1604 = vadd.f32 %v1600, %v1602
        %v1605 = vpack.c.bf16 %v1604, %v1604
        %s1606 = scalar_lea.vmem %s5, 16
        %v1607 = vld [vmem:[%s1606] sm:$0xf]
        %v1608 = vld [vmem:[%s1606 + $0x4] sm:$0xf]
        %v1609 = vld [vmem:[%s1606 + $0x8] sm:$0xf]
        %v1610 = vld [vmem:[%s1606 + $0xc] sm:$0xf]
        %s1611 = scalar_lea.vmem %s6, 1
        %v1612 = vld [vmem:[%s1611] sm:$0x1]
        %v1614 = vperm.slane %v1612, 0
        %v1620 = vunpack.c.l.b16 %v1607
        %v1621 = vunpack.c.l.b16 %v1608
        %v1622 = vunpack.c.l.b16 %v1609
        %v1623 = vunpack.c.l.b16 %v1610
        %v1624 = vpack.c.b16 %v1621, %v1620
        %v1625 = vpack.c.b16 %v1623, %v1622
        %v1629 = vsel %vm585, %v1605, 0
        %1631 = vmatpush.bf16.msra.mxu0 0
        %1632 = vmatpush.bf16.msra.mxu0 0
        %1633 = vmatpush.bf16.msra.mxu0 0
        %1634 = vmatpush.bf16.msra.mxu0 0
        %1635 = vmatpush.bf16.msra.mxu0 0
        %1636 = vmatpush.bf16.msra.mxu0 0
        %1637 = vmatpush.bf16.msra.mxu0 %v1625
        %1638 = vmatpush.bf16.msra.mxu0 %v1624
        %1639 = vmatmul.bf16.gmra.mxu0 %v1629
        %v1640 = vpop.f32.mrf.mxu0
        %v1641 = vadd.f32 %v1614, %v1640
        %v1642 = vpop.f32.mrf.mxu0
        %1643 = vdwg.mxu0
        %v1644 = vmax.f32 %v1641, 0.0
        %v1645 = vpack.c.bf16 %v1644, %v1644
        %s1646 = scalar_lea.vmem %s7, 32
        %v1647 = vld [vmem:[%s1646] sm:$0xf]
        %v1648 = vld [vmem:[%s1646 + $0x4] sm:$0xf]
        %v1649 = vld [vmem:[%s1646 + $0x8] sm:$0xf]
        %v1650 = vld [vmem:[%s1646 + $0xc] sm:$0xf]
        %v1651 = vld [vmem:[%s1646 + $0x10] sm:$0xf]
        %v1652 = vld [vmem:[%s1646 + $0x14] sm:$0xf]
        %v1653 = vld [vmem:[%s1646 + $0x18] sm:$0xf]
        %v1654 = vld [vmem:[%s1646 + $0x1c] sm:$0xf]
        %s1655 = scalar_lea.vmem %s8, 1
        %v1656 = vld [vmem:[%s1655] sm:$0x1]
        %v1658 = vperm.slane %v1656, 0
        %v1668 = vunpack.c.l.b16 %v1647
        %v1669 = vunpack.c.l.b16 %v1648
        %v1670 = vunpack.c.l.b16 %v1649
        %v1671 = vunpack.c.l.b16 %v1650
        %v1672 = vunpack.c.l.b16 %v1651
        %v1673 = vunpack.c.l.b16 %v1652
        %v1674 = vunpack.c.l.b16 %v1653
        %v1675 = vunpack.c.l.b16 %v1654
        %v1676 = vpack.c.b16 %v1669, %v1668
        %v1677 = vpack.c.b16 %v1671, %v1670
        %v1678 = vpack.c.b16 %v1673, %v1672
        %v1679 = vpack.c.b16 %v1675, %v1674
        %v1685 = vsel %vm1099, %v1645, 0
        %1687 = vmatpush.bf16.msra.mxu0 0
        %1688 = vmatpush.bf16.msra.mxu0 0
        %1689 = vmatpush.bf16.msra.mxu0 0
        %1690 = vmatpush.bf16.msra.mxu0 0
        %1691 = vmatpush.bf16.msra.mxu0 %v1679
        %1692 = vmatpush.bf16.msra.mxu0 %v1678
        %1693 = vmatpush.bf16.msra.mxu0 %v1677
        %1694 = vmatpush.bf16.msra.mxu0 %v1676
        %1695 = vmatmul.bf16.gmra.mxu0 %v1685
        %v1696 = vpop.f32.mrf.mxu0
        %v1697 = vadd.f32 %v1658, %v1696
        %v1698 = vpop.f32.mrf.mxu0
        %1699 = vdwg.mxu0
        %v1700 = vadd.f32 %v1604, %v1697
        %s1701 = scalar_lea.vmem [#allocation8], 1
        %v1702 = vld [vmem:[%s1701] sm:$0x1]
        %s1703 = scalar_lea.vmem %s12, 1
        %v1704 = vld [vmem:[%s1703] sm:$0x1]
        %v1705 = vsel %vm585, %v1700, 0.0
        %1706 = vadd.xlane.f32.xlu0 %v1705
        %v1707 = vpop.xlane.xlu0 %1706
        %v1708 = vmul.f32 %v1707, %v996
        %v1709 = vsub.f32 %v1700, %v1708
        %v1710 = vmul.f32 %v1709, %v1709
        %v1711 = vsel %vm585, %v1710, 0.0
        %1712 = vadd.xlane.f32.xlu0 %v1711
        %v1713 = vpop.xlane.xlu0 %1712
        %v1714 = vmul.f32 %v1713, %v996
        %v1715 = vadd.f32 %v1714, 1e-05
        %v1716 = vrsqrt.pop %v1715
        %v1717 = vmul.f32 %v1716, %v1715
        %v1718 = vmul.f32 %v1717, %v1716
        %v1719 = vmul.f32 0.5, %v1718
        %v1720 = vsub.f32 1.5, %v1719
        %v1721 = vmul.f32 %v1716, %v1720
        %vm1722 = vweird.f32 %v1715
        %vm1723 = vweird.f32 %v1716
        %vm1724 = vmor %vm1722, %vm1723
        %v1725 = vsel %vm1724, %v1716, %v1721
        %v1726 = vmul.f32 %v1709, %v1725
        %v1728 = vperm.slane %v1702, 0
        %v1730 = vmul.f32 %v1726, %v1728
        %v1732 = vperm.slane %v1704, 0
        %v1734 = vadd.f32 %v1730, %v1732
        %v1735 = vld [vmem:[%s13] sm:$0x1]
        %v1736 = vld [vmem:[%s14] sm:$0x1]
        %v1737 = vsel %vm585, %v1734, 0.0
        %1738 = vadd.xlane.f32.xlu0 %v1737
        %v1739 = vpop.xlane.xlu0 %1738
        %v1740 = vmul.f32 %v1739, %v996
        %v1741 = vsub.f32 %v1734, %v1740
        %v1742 = vmul.f32 %v1741, %v1741
        %v1743 = vsel %vm585, %v1742, 0.0
        %1744 = vadd.xlane.f32.xlu0 %v1743
        %v1745 = vpop.xlane.xlu0 %1744
        %v1746 = vmul.f32 %v1745, %v996
        %v1747 = vadd.f32 %v1746, 1e-05
        %v1748 = vrsqrt.pop %v1747
        %v1749 = vmul.f32 %v1748, %v1747
        %v1750 = vmul.f32 %v1749, %v1748
        %v1751 = vmul.f32 0.5, %v1750
        %v1752 = vsub.f32 1.5, %v1751
        %v1753 = vmul.f32 %v1748, %v1752
        %vm1754 = vweird.f32 %v1747
        %vm1755 = vweird.f32 %v1748
        %vm1756 = vmor %vm1754, %vm1755
        %v1757 = vsel %vm1756, %v1748, %v1753
        %v1758 = vmul.f32 %v1741, %v1757
        %v1760 = vperm.slane %v1735, 0
        %v1762 = vmul.f32 %v1758, %v1760
        %v1764 = vperm.slane %v1736, 0
        %v1766 = vadd.f32 %v1762, %v1764
        %1767 = vst.msk [vmem:[%s561] sm:$0xff] %vm585, %v1766
        %s1768 = sand.u32 %s362, 1
        %s1769 = scalar_lea.sflag [#allocation4], %s1768
        %s1770 = sand.u32 %s362, 1
        %s1771 = smul.addr %s1770, 8
        %s1772 = scalar_lea.vmem [#allocation10], %s1771
        // Predicated region
        $region97: #{tpu_custom_call.1} parent=79 // pred_check
          %p1773 = pneg %p372
        $region98: #{tpu_custom_call.1} parent=79 // pred_check_branch
          %1775 = sbr.rel (%p1773) target = $region100
        $region99: #{tpu_custom_call.1} parent=79 // pred_region
          %1777 = vsyncadd %s1769, 0
          %s1778 = smul.addr %s34, 8
          %s1779 = scalar_lea.hbm %s15, %s1778
          %s1781 = sshll.u32 %s1772, 4
          %s1782 = int_to_ptr.vmem [resolvable:$true] %s1781
          %s1783 = sshll.u32 %s1779, 4
          %s1784 = int_to_ptr.hbm [resolvable:$true] %s1783
          %1786 = dma.vmem_to_hbm [thread:$0]  %s1782, 128, %s1784, %s1769
        $region100: #{tpu_custom_call.1} parent=79 // pred_fallthru
          _
      $region80: #{tpu_custom_call.1} parent=5 // pred_fallthru
        _
      %p1787 = scmp.le.s32.totalorder 2, %s29
      // Predicated region
      $region101: #{tpu_custom_call.1} parent=5 // pred_check
        %p1788 = pneg %p1787
      $region102: #{tpu_custom_call.1} parent=5 // pred_check_branch
        %1790 = sbr.rel (%p1788) target = $region104
      $region103: #{tpu_custom_call.1} parent=5 // pred_region
        %s1791 = ssub.s32 %s29, 2
        // Predicated region
        $region105: #{tpu_custom_call.1} parent=103 // pred_check
          %p1792 = pneg %p378
        $region106: #{tpu_custom_call.1} parent=103 // pred_check_branch
          %1794 = sbr.rel (%p1792) target = $region108
        $region107: #{tpu_custom_call.1} parent=103 // pred_region
          %s1795 = sand.u32 %s363, 1
          %s1796 = scalar_lea.sflag [#allocation4], %s1795
          %s1797 = sand.u32 %s363, 1
          %s1798 = smul.addr %s1797, 8
          %s1799 = scalar_lea.vmem [#allocation10], %s1798
          %1801 = dma.done %s1796, 128
        $region108: #{tpu_custom_call.1} parent=103 // pred_fallthru
          _
      $region104: #{tpu_custom_call.1} parent=5 // pred_fallthru
        _
    $region6: #{tpu_custom_call.1} parent=1 // loop_footer
      %s33 = sadd.s32 1, %s29
    $region7: #{tpu_custom_call.1} parent=1 // loop_footer_branch
      %28 = sbr.rel target = $region3
    $region8: #{tpu_custom_call.1} parent=1 // loop_exit
      _
    %1802 = vsyncpa [#allocation3], 1
    %s1803 = scalar_lea.sflag [#allocation3], 1
    %1804 = vsyncpa %s1803, 1
    %1805 = vsyncpa [#allocation6], 1
    %1806 = vsyncpa [#allocation9], 1
    %1807 = vsyncpa [#allocation4], 1
    %s1808 = scalar_lea.sflag [#allocation4], 1
    %1809 = vsyncpa %s1808, 1

</llo_original>
